<compile_context>
chip_gen: v5e
topology: v5e:2x2
jax: 0.10.0
libtpu: 0.0.40
codegen_flags: <defaults>
</compile_context>

<pallas_src>
import functools

import jax
import jax.numpy as jnp
from jax import lax
from jax.experimental import pallas as pl
from jax.experimental.pallas import tpu as pltpu  # noqa: F401 (TPU backend)


# ----------------------------------------------------------------------------
# Fused GRUAE forward kernel.
# PyTorch GRU cell semantics (gate order r, z, n):
#   r  = sigmoid(x Wir^T + bir + h Whr^T + bhr)
#   u  = sigmoid(x Wiz^T + biz + h Whz^T + bhz)
#   n  = tanh   (x Win^T + bin + r * (h Whn^T + bhn))
#   h' = (1 - u) * n + u * h
# ----------------------------------------------------------------------------
def _gruae_fused_kernel(x_ref,        # (T*B, nin) time-major-flattened input
                        tgt_ref,      # (B, 1) int32: (seq_len - 1) mod T
                        wi_e_ref, wh_e_ref, bi_e_ref, bh_e_ref,   # encoder GRU
                        w_fce_ref, b_fce_ref,                      # fce linear
                        wi_d_ref, wh_d_ref, bi_d_ref, bh_d_ref,   # decoder GRU
                        w_fcd_ref, b_fcd_ref,                      # fcd linear
                        pred_ref,     # (B, T)
                        z_ref):       # (B, nl)
    B, T = pred_ref.shape
    nin = x_ref.shape[1]
    nh = wh_e_ref.shape[0]
    nl = w_fce_ref.shape[1]

    def gru_cell(xg, h, wh, bh):
        """One GRU step. xg = x @ W_i + b_i with fused gates (B, 3*nh)."""
        hg = jnp.dot(h, wh, preferred_element_type=jnp.float32) + bh
        r = jax.nn.sigmoid(xg[:, 0 * nh:1 * nh] + hg[:, 0 * nh:1 * nh])
        u = jax.nn.sigmoid(xg[:, 1 * nh:2 * nh] + hg[:, 1 * nh:2 * nh])
        n = jnp.tanh(xg[:, 2 * nh:3 * nh] + r * hg[:, 2 * nh:3 * nh])
        return (1.0 - u) * n + u * h

    x_flat = x_ref[...]                                  # (T*B, nin)

    # ---------------- encoder ----------------
    # Hoisted input projection for all timesteps (independent of h).
    xg_enc = (jnp.dot(x_flat, wi_e_ref[...],
                      preferred_element_type=jnp.float32)
              + bi_e_ref[...])                           # (T*B, 3*nh)
    wh_e = wh_e_ref[...]
    bh_e = bh_e_ref[...]
    tgt = tgt_ref[...]                                   # (B, 1) int32

    h = jnp.zeros((B, nh), jnp.float32)
    h_last = jnp.zeros((B, nh), jnp.float32)
    for t in range(T):                                   # static, fully unrolled
        h = gru_cell(xg_enc[t * B:(t + 1) * B, :], h, wh_e, bh_e)
        h_last = jnp.where(tgt == t, h, h_last)          # capture h at seq_len-1

    z = (jnp.dot(h_last, w_fce_ref[...], preferred_element_type=jnp.float32)
         + b_fce_ref[...])                               # (B, nl)
    z_ref[...] = z

    # ---------------- decoder ----------------
    # x_lat[:, :, :nl] = z (time-invariant), x_lat[:, :, nl] = dt = x[..., 0];
    # the input projection is decomposed accordingly, x_lat is never built.
    wi_d = wi_d_ref[...]                                 # (nl+1, 3*nh)
    zg_const = (jnp.dot(z, wi_d[:nl, :], preferred_element_type=jnp.float32)
                + bi_d_ref[...])                         # (B, 3*nh), reused ∀t
    w_dt = wi_d[nl:nl + 1, :]                            # (1, 3*nh)
    wh_d = wh_d_ref[...]
    bh_d = bh_d_ref[...]

    h = jnp.zeros((B, nh), jnp.float32)
    hs = []
    for t in range(T):                                   # static, fully unrolled
        dt_t = x_flat[t * B:(t + 1) * B, 0:1]            # (B, 1) = dt at step t
        h = gru_cell(zg_const + dt_t * w_dt, h, wh_d, bh_d)
        hs.append(h)

    # fcd folded in: one matmul over all decoder states, single (B, T) store.
    h_all = jnp.concatenate(hs, axis=0)                  # (T*B, nh)
    y = (jnp.dot(h_all, w_fcd_ref[...], preferred_element_type=jnp.float32)
         + b_fcd_ref[...])                               # (T*B, 1)
    pred_ref[...] = jnp.concatenate(
        [y[t * B:(t + 1) * B, :] for t in range(T)], axis=1)   # (B, T)


# ----------------------------------------------------------------------------
# Wrapper: one pallas_call, everything as full-array VMEM blocks (KiB total).
# ----------------------------------------------------------------------------
def gruae_forward(params, x, seq_len, nl):
    """x: (B, T, nin) batch-first (torch layout).  seq_len: (B,) ints."""
    B, T, nin = x.shape

    # Tiny host-side glue: time-major flatten + last-valid-step index.
    x_flat = jnp.transpose(x, (1, 0, 2)).reshape(T * B, nin).astype(jnp.float32)
    # (seq_len - 1) mod T reproduces torch's negative-index wrap for seq_len==0.
    tgt = (seq_len.astype(jnp.int32).reshape(B, 1) - 1) % T

    enc, dec = params["enc"], params["dec"]
    fce, fcd = params["fce"], params["fcd"]
    args = (x_flat, tgt,
            enc["wi"], enc["wh"], enc["bi"], enc["bh"],
            fce["w"], fce["b"],
            dec["wi"], dec["wh"], dec["bi"], dec["bh"],
            fcd["w"], fcd["b"])

    full = lambda shape: pl.BlockSpec(shape, lambda *_: (0,) * len(shape))

    pred, z = pl.pallas_call(
        _gruae_fused_kernel,
        out_shape=(jax.ShapeDtypeStruct((B, T), jnp.float32),
                   jax.ShapeDtypeStruct((B, nl), jnp.float32)),
        in_specs=[full(a.shape) for a in args],
        out_specs=(full((B, T)), full((B, nl))),
        # No grid: single invocation, whole problem lives in a few KiB of VMEM.
    )(*args)

    # torch: fcd(output).squeeze() with nout=1 -> (B, T); pred already (B, T).
    # TODO(synk): nout > 1 would need a (B, T, nout) pred output.
    return pred, z


# ----------------------------------------------------------------------------
# Parameter init: gate-fused, PyTorch-style U(-1/sqrt(nh), 1/sqrt(nh)).
# wi = W_ih^T (nin, 3*nh), wh = W_hh^T (nh, 3*nh), gate order [r | z | n].
# ----------------------------------------------------------------------------
def init_gru_params(key, nin, nh):
    bound = 1.0 / float(nh) ** 0.5
    ks = jax.random.split(key, 4)
    u = lambda k, s: jax.random.uniform(k, s, jnp.float32, -bound, bound)
    return {"wi": u(ks[0], (nin, 3 * nh)),
            "wh": u(ks[1], (nh, 3 * nh)),
            "bi": u(ks[2], (1, 3 * nh)),
            "bh": u(ks[3], (1, 3 * nh))}


def init_linear_params(key, nin, nout):
    bound = 1.0 / float(nin) ** 0.5
    k1, k2 = jax.random.split(key)
    return {"w": jax.random.uniform(k1, (nin, nout), jnp.float32, -bound, bound),
            "b": jax.random.uniform(k2, (1, nout), jnp.float32, -bound, bound)}


# ----------------------------------------------------------------------------
# Pure-JAX reference (lax.scan GRU, explicit x_lat) for correctness checking.
# ----------------------------------------------------------------------------
def ref_gru_sequence(x_tm, p):
    B = x_tm.shape[1]
    nh = p["wh"].shape[0]

    def step(h, xx):
        xg = xx @ p["wi"] + p["bi"]
        hg = h @ p["wh"] + p["bh"]
        r = jax.nn.sigmoid(xg[:, :nh] + hg[:, :nh])
        u = jax.nn.sigmoid(xg[:, nh:2 * nh] + hg[:, nh:2 * nh])
        n = jnp.tanh(xg[:, 2 * nh:] + r * hg[:, 2 * nh:])
        h_new = (1.0 - u) * n + u * h
        return h_new, h_new

    _, hs = lax.scan(step, jnp.zeros((B, nh), jnp.float32), x_tm)
    return hs


def ref_forward(params, x, seq_len, nl):
    B, T, _ = x.shape
    h_seq = ref_gru_sequence(jnp.transpose(x, (1, 0, 2)), params["enc"])
    h_last = h_seq[(seq_len - 1) % T, jnp.arange(B)]
    z = h_last @ params["fce"]["w"] + params["fce"]["b"]
    dt = x[:, :, 0]
    z_b = jnp.broadcast_to(z[:, None, :], (B, T, nl))
    x_lat = jnp.concatenate([z_b, dt[:, :, None]], axis=-1)
    h_dec = ref_gru_sequence(jnp.transpose(x_lat, (1, 0, 2)), params["dec"])
    h_dec_bf = jnp.transpose(h_dec, (1, 0, 2))
    out = h_dec_bf.reshape(B * T, -1) @ params["fcd"]["w"] + params["fcd"]["b"]
    return jnp.squeeze(out.reshape(B, T, -1)), z


if __name__ == "__main__":
    B, T, NIN, NH, NL, NOUT = 2, 8, 4, 32, 4, 1
    # nlayers=1, dropout=0.0 -> single-layer GRUs, dropout identity.
    # TODO(synk): nlayers >= 2 (stacked GRU + inter-layer dropout) not implemented.

    key = jax.random.PRNGKey(0)
    k_enc, k_dec, k_fce, k_fcd, k_x = jax.random.split(key, 5)

    params = {
        "enc": init_gru_params(k_enc, NIN, NH),
        "dec": init_gru_params(k_dec, NL + 1, NH),
        "fce": init_linear_params(k_fce, NH, NL),
        "fcd": init_linear_params(k_fcd, NH, NOUT),
    }

    x = jax.random.normal(k_x, (B, T, NIN), jnp.float32)
    seq_len = jnp.array([T, T - 3], dtype=jnp.int32)   # assumed >= 1 (see tgt)

    fwd = jax.jit(functools.partial(gruae_forward, nl=NL))
    pred, z = fwd(params, x, seq_len)
    jax.block_until_ready((pred, z))

    pred_ref, z_ref = ref_forward(params, x, seq_len, NL)
    assert pred.shape == (B, T) and z.shape == (B, NL)
    assert jnp.allclose(z, z_ref, atol=1e-4, rtol=1e-4), \
        float(jnp.max(jnp.abs(z - z_ref)))
    assert jnp.allclose(pred, pred_ref, atol=1e-4, rtol=1e-4), \
        float(jnp.max(jnp.abs(pred - pred_ref)))

    print("KERNEL_OK")
</pallas_src>

<mosaic_0001>
module attributes {stable_mosaic.version = 11 : i64} {
  func.func @_gruae_fused_kernel(%arg0: memref<16x4xf32, #tpu.memory_space<vmem>>, %arg1: memref<2x1xi32, #tpu.memory_space<vmem>>, %arg2: memref<4x96xf32, #tpu.memory_space<vmem>>, %arg3: memref<32x96xf32, #tpu.memory_space<vmem>>, %arg4: memref<1x96xf32, #tpu.memory_space<vmem>>, %arg5: memref<1x96xf32, #tpu.memory_space<vmem>>, %arg6: memref<32x4xf32, #tpu.memory_space<vmem>>, %arg7: memref<1x4xf32, #tpu.memory_space<vmem>>, %arg8: memref<5x96xf32, #tpu.memory_space<vmem>>, %arg9: memref<32x96xf32, #tpu.memory_space<vmem>>, %arg10: memref<1x96xf32, #tpu.memory_space<vmem>>, %arg11: memref<1x96xf32, #tpu.memory_space<vmem>>, %arg12: memref<32x1xf32, #tpu.memory_space<vmem>>, %arg13: memref<1x1xf32, #tpu.memory_space<vmem>>, %arg14: memref<2x8xf32, #tpu.memory_space<vmem>>, %arg15: memref<2x4xf32, #tpu.memory_space<vmem>>) attributes {dimension_semantics = [], scalar_prefetch = 0 : i64, scratch_operands = 0 : i64, tpu.core_type = #tpu.core_type<tc>} {
    %c0 = arith.constant 0 : index
    %c0_0 = arith.constant 0 : index
    %0 = vector.load %arg0[%c0, %c0_0] : memref<16x4xf32, #tpu.memory_space<vmem>>, vector<16x4xf32>
    %c0_1 = arith.constant 0 : index
    %c0_2 = arith.constant 0 : index
    %1 = vector.load %arg2[%c0_1, %c0_2] : memref<4x96xf32, #tpu.memory_space<vmem>>, vector<4x96xf32>
    %cst = arith.constant dense<0.000000e+00> : vector<16x96xf32>
    %2 = tpu.matmul %0, %1, %cst {dimension_numbers = #tpu.dot_dimension_numbers<[1], [0], [0], [1], [0, 0, 1, 1], [], []>} : vector<16x4xf32>, vector<4x96xf32>, vector<16x96xf32> -> vector<16x96xf32>
    %c0_3 = arith.constant 0 : index
    %c0_4 = arith.constant 0 : index
    %3 = vector.load %arg4[%c0_3, %c0_4] : memref<1x96xf32, #tpu.memory_space<vmem>>, vector<1x96xf32>
    %4 = vector.broadcast %3 : vector<1x96xf32> to vector<16x96xf32>
    %5 = arith.addf %2, %4 : vector<16x96xf32>
    %c0_5 = arith.constant 0 : index
    %c0_6 = arith.constant 0 : index
    %6 = vector.load %arg3[%c0_5, %c0_6] : memref<32x96xf32, #tpu.memory_space<vmem>>, vector<32x96xf32>
    %c0_7 = arith.constant 0 : index
    %c0_8 = arith.constant 0 : index
    %7 = vector.load %arg5[%c0_7, %c0_8] : memref<1x96xf32, #tpu.memory_space<vmem>>, vector<1x96xf32>
    %c0_9 = arith.constant 0 : index
    %c0_10 = arith.constant 0 : index
    %8 = vector.load %arg1[%c0_9, %c0_10] : memref<2x1xi32, #tpu.memory_space<vmem>>, vector<2x1xi32>
    %cst_11 = arith.constant 0.000000e+00 : f32
    %9 = vector.broadcast %cst_11 : f32 to vector<2x32xf32>
    %cst_12 = arith.constant 0.000000e+00 : f32
    %10 = vector.broadcast %cst_12 : f32 to vector<2x32xf32>
    %11 = vector.extract_strided_slice %5 {offsets = [0, 0], sizes = [2, 96], strides = [1, 1]} : vector<16x96xf32> to vector<2x96xf32>
    %cst_13 = arith.constant dense<0.000000e+00> : vector<2x96xf32>
    %12 = tpu.matmul %9, %6, %cst_13 {dimension_numbers = #tpu.dot_dimension_numbers<[1], [0], [0], [1], [0, 0, 1, 1], [], []>} : vector<2x32xf32>, vector<32x96xf32>, vector<2x96xf32> -> vector<2x96xf32>
    %13 = vector.broadcast %7 : vector<1x96xf32> to vector<2x96xf32>
    %14 = arith.addf %12, %13 : vector<2x96xf32>
    %15 = vector.extract_strided_slice %11 {offsets = [0, 0], sizes = [2, 32], strides = [1, 1]} : vector<2x96xf32> to vector<2x32xf32>
    %16 = vector.extract_strided_slice %14 {offsets = [0, 0], sizes = [2, 32], strides = [1, 1]} : vector<2x96xf32> to vector<2x32xf32>
    %17 = arith.addf %15, %16 : vector<2x32xf32>
    %18 = arith.negf %17 : vector<2x32xf32>
    %19 = math.exp %18 : vector<2x32xf32>
    %cst_14 = arith.constant 1.000000e+00 : f32
    %20 = vector.broadcast %cst_14 : f32 to vector<2x32xf32>
    %21 = arith.addf %20, %19 : vector<2x32xf32>
    %22 = arith.divf %20, %21 : vector<2x32xf32>
    %23 = vector.extract_strided_slice %11 {offsets = [0, 32], sizes = [2, 32], strides = [1, 1]} : vector<2x96xf32> to vector<2x32xf32>
    %24 = vector.extract_strided_slice %14 {offsets = [0, 32], sizes = [2, 32], strides = [1, 1]} : vector<2x96xf32> to vector<2x32xf32>
    %25 = arith.addf %23, %24 : vector<2x32xf32>
    %26 = arith.negf %25 : vector<2x32xf32>
    %27 = math.exp %26 : vector<2x32xf32>
    %cst_15 = arith.constant 1.000000e+00 : f32
    %28 = vector.broadcast %cst_15 : f32 to vector<2x32xf32>
    %29 = arith.addf %28, %27 : vector<2x32xf32>
    %30 = arith.divf %28, %29 : vector<2x32xf32>
    %31 = vector.extract_strided_slice %11 {offsets = [0, 64], sizes = [2, 32], strides = [1, 1]} : vector<2x96xf32> to vector<2x32xf32>
    %32 = vector.extract_strided_slice %14 {offsets = [0, 64], sizes = [2, 32], strides = [1, 1]} : vector<2x96xf32> to vector<2x32xf32>
    %33 = arith.mulf %22, %32 : vector<2x32xf32>
    %34 = arith.addf %31, %33 : vector<2x32xf32>
    %35 = math.tanh %34 : vector<2x32xf32>
    %cst_16 = arith.constant 1.000000e+00 : f32
    %36 = vector.broadcast %cst_16 : f32 to vector<2x32xf32>
    %37 = arith.subf %36, %30 : vector<2x32xf32>
    %38 = arith.mulf %37, %35 : vector<2x32xf32>
    %39 = arith.mulf %30, %9 : vector<2x32xf32>
    %40 = arith.addf %38, %39 : vector<2x32xf32>
    %c0_i32 = arith.constant 0 : i32
    %41 = vector.broadcast %c0_i32 : i32 to vector<2x1xi32>
    %42 = arith.cmpi eq, %8, %41 : vector<2x1xi32>
    %43 = vector.shape_cast %42 : vector<2x1xi1> to vector<2x1xi1>
    %44 = vector.broadcast %43 : vector<2x1xi1> to vector<2x32xi1>
    %45 = arith.select %44, %40, %10 : vector<2x32xi1>, vector<2x32xf32>
    %46 = vector.extract_strided_slice %5 {offsets = [2, 0], sizes = [2, 96], strides = [1, 1]} : vector<16x96xf32> to vector<2x96xf32>
    %cst_17 = arith.constant dense<0.000000e+00> : vector<2x96xf32>
    %47 = tpu.matmul %40, %6, %cst_17 {dimension_numbers = #tpu.dot_dimension_numbers<[1], [0], [0], [1], [0, 0, 1, 1], [], []>} : vector<2x32xf32>, vector<32x96xf32>, vector<2x96xf32> -> vector<2x96xf32>
    %48 = vector.broadcast %7 : vector<1x96xf32> to vector<2x96xf32>
    %49 = arith.addf %47, %48 : vector<2x96xf32>
    %50 = vector.extract_strided_slice %46 {offsets = [0, 0], sizes = [2, 32], strides = [1, 1]} : vector<2x96xf32> to vector<2x32xf32>
    %51 = vector.extract_strided_slice %49 {offsets = [0, 0], sizes = [2, 32], strides = [1, 1]} : vector<2x96xf32> to vector<2x32xf32>
    %52 = arith.addf %50, %51 : vector<2x32xf32>
    %53 = arith.negf %52 : vector<2x32xf32>
    %54 = math.exp %53 : vector<2x32xf32>
    %cst_18 = arith.constant 1.000000e+00 : f32
    %55 = vector.broadcast %cst_18 : f32 to vector<2x32xf32>
    %56 = arith.addf %55, %54 : vector<2x32xf32>
    %57 = arith.divf %55, %56 : vector<2x32xf32>
    %58 = vector.extract_strided_slice %46 {offsets = [0, 32], sizes = [2, 32], strides = [1, 1]} : vector<2x96xf32> to vector<2x32xf32>
    %59 = vector.extract_strided_slice %49 {offsets = [0, 32], sizes = [2, 32], strides = [1, 1]} : vector<2x96xf32> to vector<2x32xf32>
    %60 = arith.addf %58, %59 : vector<2x32xf32>
    %61 = arith.negf %60 : vector<2x32xf32>
    %62 = math.exp %61 : vector<2x32xf32>
    %cst_19 = arith.constant 1.000000e+00 : f32
    %63 = vector.broadcast %cst_19 : f32 to vector<2x32xf32>
    %64 = arith.addf %63, %62 : vector<2x32xf32>
    %65 = arith.divf %63, %64 : vector<2x32xf32>
    %66 = vector.extract_strided_slice %46 {offsets = [0, 64], sizes = [2, 32], strides = [1, 1]} : vector<2x96xf32> to vector<2x32xf32>
    %67 = vector.extract_strided_slice %49 {offsets = [0, 64], sizes = [2, 32], strides = [1, 1]} : vector<2x96xf32> to vector<2x32xf32>
    %68 = arith.mulf %57, %67 : vector<2x32xf32>
    %69 = arith.addf %66, %68 : vector<2x32xf32>
    %70 = math.tanh %69 : vector<2x32xf32>
    %cst_20 = arith.constant 1.000000e+00 : f32
    %71 = vector.broadcast %cst_20 : f32 to vector<2x32xf32>
    %72 = arith.subf %71, %65 : vector<2x32xf32>
    %73 = arith.mulf %72, %70 : vector<2x32xf32>
    %74 = arith.mulf %65, %40 : vector<2x32xf32>
    %75 = arith.addf %73, %74 : vector<2x32xf32>
    %c1_i32 = arith.constant 1 : i32
    %76 = vector.broadcast %c1_i32 : i32 to vector<2x1xi32>
    %77 = arith.cmpi eq, %8, %76 : vector<2x1xi32>
    %78 = vector.shape_cast %77 : vector<2x1xi1> to vector<2x1xi1>
    %79 = vector.broadcast %78 : vector<2x1xi1> to vector<2x32xi1>
    %80 = arith.select %79, %75, %45 : vector<2x32xi1>, vector<2x32xf32>
    %81 = vector.extract_strided_slice %5 {offsets = [4, 0], sizes = [2, 96], strides = [1, 1]} : vector<16x96xf32> to vector<2x96xf32>
    %cst_21 = arith.constant dense<0.000000e+00> : vector<2x96xf32>
    %82 = tpu.matmul %75, %6, %cst_21 {dimension_numbers = #tpu.dot_dimension_numbers<[1], [0], [0], [1], [0, 0, 1, 1], [], []>} : vector<2x32xf32>, vector<32x96xf32>, vector<2x96xf32> -> vector<2x96xf32>
    %83 = vector.broadcast %7 : vector<1x96xf32> to vector<2x96xf32>
    %84 = arith.addf %82, %83 : vector<2x96xf32>
    %85 = vector.extract_strided_slice %81 {offsets = [0, 0], sizes = [2, 32], strides = [1, 1]} : vector<2x96xf32> to vector<2x32xf32>
    %86 = vector.extract_strided_slice %84 {offsets = [0, 0], sizes = [2, 32], strides = [1, 1]} : vector<2x96xf32> to vector<2x32xf32>
    %87 = arith.addf %85, %86 : vector<2x32xf32>
    %88 = arith.negf %87 : vector<2x32xf32>
    %89 = math.exp %88 : vector<2x32xf32>
    %cst_22 = arith.constant 1.000000e+00 : f32
    %90 = vector.broadcast %cst_22 : f32 to vector<2x32xf32>
    %91 = arith.addf %90, %89 : vector<2x32xf32>
    %92 = arith.divf %90, %91 : vector<2x32xf32>
    %93 = vector.extract_strided_slice %81 {offsets = [0, 32], sizes = [2, 32], strides = [1, 1]} : vector<2x96xf32> to vector<2x32xf32>
    %94 = vector.extract_strided_slice %84 {offsets = [0, 32], sizes = [2, 32], strides = [1, 1]} : vector<2x96xf32> to vector<2x32xf32>
    %95 = arith.addf %93, %94 : vector<2x32xf32>
    %96 = arith.negf %95 : vector<2x32xf32>
    %97 = math.exp %96 : vector<2x32xf32>
    %cst_23 = arith.constant 1.000000e+00 : f32
    %98 = vector.broadcast %cst_23 : f32 to vector<2x32xf32>
    %99 = arith.addf %98, %97 : vector<2x32xf32>
    %100 = arith.divf %98, %99 : vector<2x32xf32>
    %101 = vector.extract_strided_slice %81 {offsets = [0, 64], sizes = [2, 32], strides = [1, 1]} : vector<2x96xf32> to vector<2x32xf32>
    %102 = vector.extract_strided_slice %84 {offsets = [0, 64], sizes = [2, 32], strides = [1, 1]} : vector<2x96xf32> to vector<2x32xf32>
    %103 = arith.mulf %92, %102 : vector<2x32xf32>
    %104 = arith.addf %101, %103 : vector<2x32xf32>
    %105 = math.tanh %104 : vector<2x32xf32>
    %cst_24 = arith.constant 1.000000e+00 : f32
    %106 = vector.broadcast %cst_24 : f32 to vector<2x32xf32>
    %107 = arith.subf %106, %100 : vector<2x32xf32>
    %108 = arith.mulf %107, %105 : vector<2x32xf32>
    %109 = arith.mulf %100, %75 : vector<2x32xf32>
    %110 = arith.addf %108, %109 : vector<2x32xf32>
    %c2_i32 = arith.constant 2 : i32
    %111 = vector.broadcast %c2_i32 : i32 to vector<2x1xi32>
    %112 = arith.cmpi eq, %8, %111 : vector<2x1xi32>
    %113 = vector.shape_cast %112 : vector<2x1xi1> to vector<2x1xi1>
    %114 = vector.broadcast %113 : vector<2x1xi1> to vector<2x32xi1>
    %115 = arith.select %114, %110, %80 : vector<2x32xi1>, vector<2x32xf32>
    %116 = vector.extract_strided_slice %5 {offsets = [6, 0], sizes = [2, 96], strides = [1, 1]} : vector<16x96xf32> to vector<2x96xf32>
    %cst_25 = arith.constant dense<0.000000e+00> : vector<2x96xf32>
    %117 = tpu.matmul %110, %6, %cst_25 {dimension_numbers = #tpu.dot_dimension_numbers<[1], [0], [0], [1], [0, 0, 1, 1], [], []>} : vector<2x32xf32>, vector<32x96xf32>, vector<2x96xf32> -> vector<2x96xf32>
    %118 = vector.broadcast %7 : vector<1x96xf32> to vector<2x96xf32>
    %119 = arith.addf %117, %118 : vector<2x96xf32>
    %120 = vector.extract_strided_slice %116 {offsets = [0, 0], sizes = [2, 32], strides = [1, 1]} : vector<2x96xf32> to vector<2x32xf32>
    %121 = vector.extract_strided_slice %119 {offsets = [0, 0], sizes = [2, 32], strides = [1, 1]} : vector<2x96xf32> to vector<2x32xf32>
    %122 = arith.addf %120, %121 : vector<2x32xf32>
    %123 = arith.negf %122 : vector<2x32xf32>
    %124 = math.exp %123 : vector<2x32xf32>
    %cst_26 = arith.constant 1.000000e+00 : f32
    %125 = vector.broadcast %cst_26 : f32 to vector<2x32xf32>
    %126 = arith.addf %125, %124 : vector<2x32xf32>
    %127 = arith.divf %125, %126 : vector<2x32xf32>
    %128 = vector.extract_strided_slice %116 {offsets = [0, 32], sizes = [2, 32], strides = [1, 1]} : vector<2x96xf32> to vector<2x32xf32>
    %129 = vector.extract_strided_slice %119 {offsets = [0, 32], sizes = [2, 32], strides = [1, 1]} : vector<2x96xf32> to vector<2x32xf32>
    %130 = arith.addf %128, %129 : vector<2x32xf32>
    %131 = arith.negf %130 : vector<2x32xf32>
    %132 = math.exp %131 : vector<2x32xf32>
    %cst_27 = arith.constant 1.000000e+00 : f32
    %133 = vector.broadcast %cst_27 : f32 to vector<2x32xf32>
    %134 = arith.addf %133, %132 : vector<2x32xf32>
    %135 = arith.divf %133, %134 : vector<2x32xf32>
    %136 = vector.extract_strided_slice %116 {offsets = [0, 64], sizes = [2, 32], strides = [1, 1]} : vector<2x96xf32> to vector<2x32xf32>
    %137 = vector.extract_strided_slice %119 {offsets = [0, 64], sizes = [2, 32], strides = [1, 1]} : vector<2x96xf32> to vector<2x32xf32>
    %138 = arith.mulf %127, %137 : vector<2x32xf32>
    %139 = arith.addf %136, %138 : vector<2x32xf32>
    %140 = math.tanh %139 : vector<2x32xf32>
    %cst_28 = arith.constant 1.000000e+00 : f32
    %141 = vector.broadcast %cst_28 : f32 to vector<2x32xf32>
    %142 = arith.subf %141, %135 : vector<2x32xf32>
    %143 = arith.mulf %142, %140 : vector<2x32xf32>
    %144 = arith.mulf %135, %110 : vector<2x32xf32>
    %145 = arith.addf %143, %144 : vector<2x32xf32>
    %c3_i32 = arith.constant 3 : i32
    %146 = vector.broadcast %c3_i32 : i32 to vector<2x1xi32>
    %147 = arith.cmpi eq, %8, %146 : vector<2x1xi32>
    %148 = vector.shape_cast %147 : vector<2x1xi1> to vector<2x1xi1>
    %149 = vector.broadcast %148 : vector<2x1xi1> to vector<2x32xi1>
    %150 = arith.select %149, %145, %115 : vector<2x32xi1>, vector<2x32xf32>
    %151 = vector.extract_strided_slice %5 {offsets = [8, 0], sizes = [2, 96], strides = [1, 1]} : vector<16x96xf32> to vector<2x96xf32>
    %cst_29 = arith.constant dense<0.000000e+00> : vector<2x96xf32>
    %152 = tpu.matmul %145, %6, %cst_29 {dimension_numbers = #tpu.dot_dimension_numbers<[1], [0], [0], [1], [0, 0, 1, 1], [], []>} : vector<2x32xf32>, vector<32x96xf32>, vector<2x96xf32> -> vector<2x96xf32>
    %153 = vector.broadcast %7 : vector<1x96xf32> to vector<2x96xf32>
    %154 = arith.addf %152, %153 : vector<2x96xf32>
    %155 = vector.extract_strided_slice %151 {offsets = [0, 0], sizes = [2, 32], strides = [1, 1]} : vector<2x96xf32> to vector<2x32xf32>
    %156 = vector.extract_strided_slice %154 {offsets = [0, 0], sizes = [2, 32], strides = [1, 1]} : vector<2x96xf32> to vector<2x32xf32>
    %157 = arith.addf %155, %156 : vector<2x32xf32>
    %158 = arith.negf %157 : vector<2x32xf32>
    %159 = math.exp %158 : vector<2x32xf32>
    %cst_30 = arith.constant 1.000000e+00 : f32
    %160 = vector.broadcast %cst_30 : f32 to vector<2x32xf32>
    %161 = arith.addf %160, %159 : vector<2x32xf32>
    %162 = arith.divf %160, %161 : vector<2x32xf32>
    %163 = vector.extract_strided_slice %151 {offsets = [0, 32], sizes = [2, 32], strides = [1, 1]} : vector<2x96xf32> to vector<2x32xf32>
    %164 = vector.extract_strided_slice %154 {offsets = [0, 32], sizes = [2, 32], strides = [1, 1]} : vector<2x96xf32> to vector<2x32xf32>
    %165 = arith.addf %163, %164 : vector<2x32xf32>
    %166 = arith.negf %165 : vector<2x32xf32>
    %167 = math.exp %166 : vector<2x32xf32>
    %cst_31 = arith.constant 1.000000e+00 : f32
    %168 = vector.broadcast %cst_31 : f32 to vector<2x32xf32>
    %169 = arith.addf %168, %167 : vector<2x32xf32>
    %170 = arith.divf %168, %169 : vector<2x32xf32>
    %171 = vector.extract_strided_slice %151 {offsets = [0, 64], sizes = [2, 32], strides = [1, 1]} : vector<2x96xf32> to vector<2x32xf32>
    %172 = vector.extract_strided_slice %154 {offsets = [0, 64], sizes = [2, 32], strides = [1, 1]} : vector<2x96xf32> to vector<2x32xf32>
    %173 = arith.mulf %162, %172 : vector<2x32xf32>
    %174 = arith.addf %171, %173 : vector<2x32xf32>
    %175 = math.tanh %174 : vector<2x32xf32>
    %cst_32 = arith.constant 1.000000e+00 : f32
    %176 = vector.broadcast %cst_32 : f32 to vector<2x32xf32>
    %177 = arith.subf %176, %170 : vector<2x32xf32>
    %178 = arith.mulf %177, %175 : vector<2x32xf32>
    %179 = arith.mulf %170, %145 : vector<2x32xf32>
    %180 = arith.addf %178, %179 : vector<2x32xf32>
    %c4_i32 = arith.constant 4 : i32
    %181 = vector.broadcast %c4_i32 : i32 to vector<2x1xi32>
    %182 = arith.cmpi eq, %8, %181 : vector<2x1xi32>
    %183 = vector.shape_cast %182 : vector<2x1xi1> to vector<2x1xi1>
    %184 = vector.broadcast %183 : vector<2x1xi1> to vector<2x32xi1>
    %185 = arith.select %184, %180, %150 : vector<2x32xi1>, vector<2x32xf32>
    %186 = vector.extract_strided_slice %5 {offsets = [10, 0], sizes = [2, 96], strides = [1, 1]} : vector<16x96xf32> to vector<2x96xf32>
    %cst_33 = arith.constant dense<0.000000e+00> : vector<2x96xf32>
    %187 = tpu.matmul %180, %6, %cst_33 {dimension_numbers = #tpu.dot_dimension_numbers<[1], [0], [0], [1], [0, 0, 1, 1], [], []>} : vector<2x32xf32>, vector<32x96xf32>, vector<2x96xf32> -> vector<2x96xf32>
    %188 = vector.broadcast %7 : vector<1x96xf32> to vector<2x96xf32>
    %189 = arith.addf %187, %188 : vector<2x96xf32>
    %190 = vector.extract_strided_slice %186 {offsets = [0, 0], sizes = [2, 32], strides = [1, 1]} : vector<2x96xf32> to vector<2x32xf32>
    %191 = vector.extract_strided_slice %189 {offsets = [0, 0], sizes = [2, 32], strides = [1, 1]} : vector<2x96xf32> to vector<2x32xf32>
    %192 = arith.addf %190, %191 : vector<2x32xf32>
    %193 = arith.negf %192 : vector<2x32xf32>
    %194 = math.exp %193 : vector<2x32xf32>
    %cst_34 = arith.constant 1.000000e+00 : f32
    %195 = vector.broadcast %cst_34 : f32 to vector<2x32xf32>
    %196 = arith.addf %195, %194 : vector<2x32xf32>
    %197 = arith.divf %195, %196 : vector<2x32xf32>
    %198 = vector.extract_strided_slice %186 {offsets = [0, 32], sizes = [2, 32], strides = [1, 1]} : vector<2x96xf32> to vector<2x32xf32>
    %199 = vector.extract_strided_slice %189 {offsets = [0, 32], sizes = [2, 32], strides = [1, 1]} : vector<2x96xf32> to vector<2x32xf32>
    %200 = arith.addf %198, %199 : vector<2x32xf32>
    %201 = arith.negf %200 : vector<2x32xf32>
    %202 = math.exp %201 : vector<2x32xf32>
    %cst_35 = arith.constant 1.000000e+00 : f32
    %203 = vector.broadcast %cst_35 : f32 to vector<2x32xf32>
    %204 = arith.addf %203, %202 : vector<2x32xf32>
    %205 = arith.divf %203, %204 : vector<2x32xf32>
    %206 = vector.extract_strided_slice %186 {offsets = [0, 64], sizes = [2, 32], strides = [1, 1]} : vector<2x96xf32> to vector<2x32xf32>
    %207 = vector.extract_strided_slice %189 {offsets = [0, 64], sizes = [2, 32], strides = [1, 1]} : vector<2x96xf32> to vector<2x32xf32>
    %208 = arith.mulf %197, %207 : vector<2x32xf32>
    %209 = arith.addf %206, %208 : vector<2x32xf32>
    %210 = math.tanh %209 : vector<2x32xf32>
    %cst_36 = arith.constant 1.000000e+00 : f32
    %211 = vector.broadcast %cst_36 : f32 to vector<2x32xf32>
    %212 = arith.subf %211, %205 : vector<2x32xf32>
    %213 = arith.mulf %212, %210 : vector<2x32xf32>
    %214 = arith.mulf %205, %180 : vector<2x32xf32>
    %215 = arith.addf %213, %214 : vector<2x32xf32>
    %c5_i32 = arith.constant 5 : i32
    %216 = vector.broadcast %c5_i32 : i32 to vector<2x1xi32>
    %217 = arith.cmpi eq, %8, %216 : vector<2x1xi32>
    %218 = vector.shape_cast %217 : vector<2x1xi1> to vector<2x1xi1>
    %219 = vector.broadcast %218 : vector<2x1xi1> to vector<2x32xi1>
    %220 = arith.select %219, %215, %185 : vector<2x32xi1>, vector<2x32xf32>
    %221 = vector.extract_strided_slice %5 {offsets = [12, 0], sizes = [2, 96], strides = [1, 1]} : vector<16x96xf32> to vector<2x96xf32>
    %cst_37 = arith.constant dense<0.000000e+00> : vector<2x96xf32>
    %222 = tpu.matmul %215, %6, %cst_37 {dimension_numbers = #tpu.dot_dimension_numbers<[1], [0], [0], [1], [0, 0, 1, 1], [], []>} : vector<2x32xf32>, vector<32x96xf32>, vector<2x96xf32> -> vector<2x96xf32>
    %223 = vector.broadcast %7 : vector<1x96xf32> to vector<2x96xf32>
    %224 = arith.addf %222, %223 : vector<2x96xf32>
    %225 = vector.extract_strided_slice %221 {offsets = [0, 0], sizes = [2, 32], strides = [1, 1]} : vector<2x96xf32> to vector<2x32xf32>
    %226 = vector.extract_strided_slice %224 {offsets = [0, 0], sizes = [2, 32], strides = [1, 1]} : vector<2x96xf32> to vector<2x32xf32>
    %227 = arith.addf %225, %226 : vector<2x32xf32>
    %228 = arith.negf %227 : vector<2x32xf32>
    %229 = math.exp %228 : vector<2x32xf32>
    %cst_38 = arith.constant 1.000000e+00 : f32
    %230 = vector.broadcast %cst_38 : f32 to vector<2x32xf32>
    %231 = arith.addf %230, %229 : vector<2x32xf32>
    %232 = arith.divf %230, %231 : vector<2x32xf32>
    %233 = vector.extract_strided_slice %221 {offsets = [0, 32], sizes = [2, 32], strides = [1, 1]} : vector<2x96xf32> to vector<2x32xf32>
    %234 = vector.extract_strided_slice %224 {offsets = [0, 32], sizes = [2, 32], strides = [1, 1]} : vector<2x96xf32> to vector<2x32xf32>
    %235 = arith.addf %233, %234 : vector<2x32xf32>
    %236 = arith.negf %235 : vector<2x32xf32>
    %237 = math.exp %236 : vector<2x32xf32>
    %cst_39 = arith.constant 1.000000e+00 : f32
    %238 = vector.broadcast %cst_39 : f32 to vector<2x32xf32>
    %239 = arith.addf %238, %237 : vector<2x32xf32>
    %240 = arith.divf %238, %239 : vector<2x32xf32>
    %241 = vector.extract_strided_slice %221 {offsets = [0, 64], sizes = [2, 32], strides = [1, 1]} : vector<2x96xf32> to vector<2x32xf32>
    %242 = vector.extract_strided_slice %224 {offsets = [0, 64], sizes = [2, 32], strides = [1, 1]} : vector<2x96xf32> to vector<2x32xf32>
    %243 = arith.mulf %232, %242 : vector<2x32xf32>
    %244 = arith.addf %241, %243 : vector<2x32xf32>
    %245 = math.tanh %244 : vector<2x32xf32>
    %cst_40 = arith.constant 1.000000e+00 : f32
    %246 = vector.broadcast %cst_40 : f32 to vector<2x32xf32>
    %247 = arith.subf %246, %240 : vector<2x32xf32>
    %248 = arith.mulf %247, %245 : vector<2x32xf32>
    %249 = arith.mulf %240, %215 : vector<2x32xf32>
    %250 = arith.addf %248, %249 : vector<2x32xf32>
    %c6_i32 = arith.constant 6 : i32
    %251 = vector.broadcast %c6_i32 : i32 to vector<2x1xi32>
    %252 = arith.cmpi eq, %8, %251 : vector<2x1xi32>
    %253 = vector.shape_cast %252 : vector<2x1xi1> to vector<2x1xi1>
    %254 = vector.broadcast %253 : vector<2x1xi1> to vector<2x32xi1>
    %255 = arith.select %254, %250, %220 : vector<2x32xi1>, vector<2x32xf32>
    %256 = vector.extract_strided_slice %5 {offsets = [14, 0], sizes = [2, 96], strides = [1, 1]} : vector<16x96xf32> to vector<2x96xf32>
    %cst_41 = arith.constant dense<0.000000e+00> : vector<2x96xf32>
    %257 = tpu.matmul %250, %6, %cst_41 {dimension_numbers = #tpu.dot_dimension_numbers<[1], [0], [0], [1], [0, 0, 1, 1], [], []>} : vector<2x32xf32>, vector<32x96xf32>, vector<2x96xf32> -> vector<2x96xf32>
    %258 = vector.broadcast %7 : vector<1x96xf32> to vector<2x96xf32>
    %259 = arith.addf %257, %258 : vector<2x96xf32>
    %260 = vector.extract_strided_slice %256 {offsets = [0, 0], sizes = [2, 32], strides = [1, 1]} : vector<2x96xf32> to vector<2x32xf32>
    %261 = vector.extract_strided_slice %259 {offsets = [0, 0], sizes = [2, 32], strides = [1, 1]} : vector<2x96xf32> to vector<2x32xf32>
    %262 = arith.addf %260, %261 : vector<2x32xf32>
    %263 = arith.negf %262 : vector<2x32xf32>
    %264 = math.exp %263 : vector<2x32xf32>
    %cst_42 = arith.constant 1.000000e+00 : f32
    %265 = vector.broadcast %cst_42 : f32 to vector<2x32xf32>
    %266 = arith.addf %265, %264 : vector<2x32xf32>
    %267 = arith.divf %265, %266 : vector<2x32xf32>
    %268 = vector.extract_strided_slice %256 {offsets = [0, 32], sizes = [2, 32], strides = [1, 1]} : vector<2x96xf32> to vector<2x32xf32>
    %269 = vector.extract_strided_slice %259 {offsets = [0, 32], sizes = [2, 32], strides = [1, 1]} : vector<2x96xf32> to vector<2x32xf32>
    %270 = arith.addf %268, %269 : vector<2x32xf32>
    %271 = arith.negf %270 : vector<2x32xf32>
    %272 = math.exp %271 : vector<2x32xf32>
    %cst_43 = arith.constant 1.000000e+00 : f32
    %273 = vector.broadcast %cst_43 : f32 to vector<2x32xf32>
    %274 = arith.addf %273, %272 : vector<2x32xf32>
    %275 = arith.divf %273, %274 : vector<2x32xf32>
    %276 = vector.extract_strided_slice %256 {offsets = [0, 64], sizes = [2, 32], strides = [1, 1]} : vector<2x96xf32> to vector<2x32xf32>
    %277 = vector.extract_strided_slice %259 {offsets = [0, 64], sizes = [2, 32], strides = [1, 1]} : vector<2x96xf32> to vector<2x32xf32>
    %278 = arith.mulf %267, %277 : vector<2x32xf32>
    %279 = arith.addf %276, %278 : vector<2x32xf32>
    %280 = math.tanh %279 : vector<2x32xf32>
    %cst_44 = arith.constant 1.000000e+00 : f32
    %281 = vector.broadcast %cst_44 : f32 to vector<2x32xf32>
    %282 = arith.subf %281, %275 : vector<2x32xf32>
    %283 = arith.mulf %282, %280 : vector<2x32xf32>
    %284 = arith.mulf %275, %250 : vector<2x32xf32>
    %285 = arith.addf %283, %284 : vector<2x32xf32>
    %c7_i32 = arith.constant 7 : i32
    %286 = vector.broadcast %c7_i32 : i32 to vector<2x1xi32>
    %287 = arith.cmpi eq, %8, %286 : vector<2x1xi32>
    %288 = vector.shape_cast %287 : vector<2x1xi1> to vector<2x1xi1>
    %289 = vector.broadcast %288 : vector<2x1xi1> to vector<2x32xi1>
    %290 = arith.select %289, %285, %255 : vector<2x32xi1>, vector<2x32xf32>
    %c0_45 = arith.constant 0 : index
    %c0_46 = arith.constant 0 : index
    %291 = vector.load %arg6[%c0_45, %c0_46] : memref<32x4xf32, #tpu.memory_space<vmem>>, vector<32x4xf32>
    %cst_47 = arith.constant dense<0.000000e+00> : vector<2x4xf32>
    %292 = tpu.matmul %290, %291, %cst_47 {dimension_numbers = #tpu.dot_dimension_numbers<[1], [0], [0], [1], [0, 0, 1, 1], [], []>} : vector<2x32xf32>, vector<32x4xf32>, vector<2x4xf32> -> vector<2x4xf32>
    %c0_48 = arith.constant 0 : index
    %c0_49 = arith.constant 0 : index
    %293 = vector.load %arg7[%c0_48, %c0_49] : memref<1x4xf32, #tpu.memory_space<vmem>>, vector<1x4xf32>
    %294 = vector.broadcast %293 : vector<1x4xf32> to vector<2x4xf32>
    %295 = arith.addf %292, %294 : vector<2x4xf32>
    %c0_50 = arith.constant 0 : index
    %c0_51 = arith.constant 0 : index
    %296 = vector.load %arg15[%c0_50, %c0_51] : memref<2x4xf32, #tpu.memory_space<vmem>>, vector<2x4xf32>
    tpu.vector_store %arg15[%c0_50, %c0_51], %295 {strides = array<i32>} : memref<2x4xf32, #tpu.memory_space<vmem>>, vector<2x4xf32>,
    %c0_52 = arith.constant 0 : index
    %c0_53 = arith.constant 0 : index
    %297 = vector.load %arg8[%c0_52, %c0_53] : memref<5x96xf32, #tpu.memory_space<vmem>>, vector<5x96xf32>
    %298 = vector.extract_strided_slice %297 {offsets = [0, 0], sizes = [4, 96], strides = [1, 1]} : vector<5x96xf32> to vector<4x96xf32>
    %cst_54 = arith.constant dense<0.000000e+00> : vector<2x96xf32>
    %299 = tpu.matmul %295, %298, %cst_54 {dimension_numbers = #tpu.dot_dimension_numbers<[1], [0], [0], [1], [0, 0, 1, 1], [], []>} : vector<2x4xf32>, vector<4x96xf32>, vector<2x96xf32> -> vector<2x96xf32>
    %c0_55 = arith.constant 0 : index
    %c0_56 = arith.constant 0 : index
    %300 = vector.load %arg10[%c0_55, %c0_56] : memref<1x96xf32, #tpu.memory_space<vmem>>, vector<1x96xf32>
    %301 = vector.broadcast %300 : vector<1x96xf32> to vector<2x96xf32>
    %302 = arith.addf %299, %301 : vector<2x96xf32>
    %303 = vector.extract_strided_slice %297 {offsets = [4, 0], sizes = [1, 96], strides = [1, 1]} : vector<5x96xf32> to vector<1x96xf32>
    %c0_57 = arith.constant 0 : index
    %c0_58 = arith.constant 0 : index
    %304 = vector.load %arg9[%c0_57, %c0_58] : memref<32x96xf32, #tpu.memory_space<vmem>>, vector<32x96xf32>
    %c0_59 = arith.constant 0 : index
    %c0_60 = arith.constant 0 : index
    %305 = vector.load %arg11[%c0_59, %c0_60] : memref<1x96xf32, #tpu.memory_space<vmem>>, vector<1x96xf32>
    %cst_61 = arith.constant 0.000000e+00 : f32
    %306 = vector.broadcast %cst_61 : f32 to vector<2x32xf32>
    %307 = vector.extract_strided_slice %0 {offsets = [0, 0], sizes = [2, 1], strides = [1, 1]} : vector<16x4xf32> to vector<2x1xf32>
    %308 = vector.broadcast %307 : vector<2x1xf32> to vector<2x96xf32>
    %309 = vector.broadcast %303 : vector<1x96xf32> to vector<2x96xf32>
    %310 = arith.mulf %308, %309 : vector<2x96xf32>
    %311 = arith.addf %302, %310 : vector<2x96xf32>
    %cst_62 = arith.constant dense<0.000000e+00> : vector<2x96xf32>
    %312 = tpu.matmul %306, %304, %cst_62 {dimension_numbers = #tpu.dot_dimension_numbers<[1], [0], [0], [1], [0, 0, 1, 1], [], []>} : vector<2x32xf32>, vector<32x96xf32>, vector<2x96xf32> -> vector<2x96xf32>
    %313 = vector.broadcast %305 : vector<1x96xf32> to vector<2x96xf32>
    %314 = arith.addf %312, %313 : vector<2x96xf32>
    %315 = vector.extract_strided_slice %311 {offsets = [0, 0], sizes = [2, 32], strides = [1, 1]} : vector<2x96xf32> to vector<2x32xf32>
    %316 = vector.extract_strided_slice %314 {offsets = [0, 0], sizes = [2, 32], strides = [1, 1]} : vector<2x96xf32> to vector<2x32xf32>
    %317 = arith.addf %315, %316 : vector<2x32xf32>
    %318 = arith.negf %317 : vector<2x32xf32>
    %319 = math.exp %318 : vector<2x32xf32>
    %cst_63 = arith.constant 1.000000e+00 : f32
    %320 = vector.broadcast %cst_63 : f32 to vector<2x32xf32>
    %321 = arith.addf %320, %319 : vector<2x32xf32>
    %322 = arith.divf %320, %321 : vector<2x32xf32>
    %323 = vector.extract_strided_slice %311 {offsets = [0, 32], sizes = [2, 32], strides = [1, 1]} : vector<2x96xf32> to vector<2x32xf32>
    %324 = vector.extract_strided_slice %314 {offsets = [0, 32], sizes = [2, 32], strides = [1, 1]} : vector<2x96xf32> to vector<2x32xf32>
    %325 = arith.addf %323, %324 : vector<2x32xf32>
    %326 = arith.negf %325 : vector<2x32xf32>
    %327 = math.exp %326 : vector<2x32xf32>
    %cst_64 = arith.constant 1.000000e+00 : f32
    %328 = vector.broadcast %cst_64 : f32 to vector<2x32xf32>
    %329 = arith.addf %328, %327 : vector<2x32xf32>
    %330 = arith.divf %328, %329 : vector<2x32xf32>
    %331 = vector.extract_strided_slice %311 {offsets = [0, 64], sizes = [2, 32], strides = [1, 1]} : vector<2x96xf32> to vector<2x32xf32>
    %332 = vector.extract_strided_slice %314 {offsets = [0, 64], sizes = [2, 32], strides = [1, 1]} : vector<2x96xf32> to vector<2x32xf32>
    %333 = arith.mulf %322, %332 : vector<2x32xf32>
    %334 = arith.addf %331, %333 : vector<2x32xf32>
    %335 = math.tanh %334 : vector<2x32xf32>
    %cst_65 = arith.constant 1.000000e+00 : f32
    %336 = vector.broadcast %cst_65 : f32 to vector<2x32xf32>
    %337 = arith.subf %336, %330 : vector<2x32xf32>
    %338 = arith.mulf %337, %335 : vector<2x32xf32>
    %339 = arith.mulf %330, %306 : vector<2x32xf32>
    %340 = arith.addf %338, %339 : vector<2x32xf32>
    %341 = vector.extract_strided_slice %0 {offsets = [2, 0], sizes = [2, 1], strides = [1, 1]} : vector<16x4xf32> to vector<2x1xf32>
    %342 = vector.broadcast %341 : vector<2x1xf32> to vector<2x96xf32>
    %343 = vector.broadcast %303 : vector<1x96xf32> to vector<2x96xf32>
    %344 = arith.mulf %342, %343 : vector<2x96xf32>
    %345 = arith.addf %302, %344 : vector<2x96xf32>
    %cst_66 = arith.constant dense<0.000000e+00> : vector<2x96xf32>
    %346 = tpu.matmul %340, %304, %cst_66 {dimension_numbers = #tpu.dot_dimension_numbers<[1], [0], [0], [1], [0, 0, 1, 1], [], []>} : vector<2x32xf32>, vector<32x96xf32>, vector<2x96xf32> -> vector<2x96xf32>
    %347 = vector.broadcast %305 : vector<1x96xf32> to vector<2x96xf32>
    %348 = arith.addf %346, %347 : vector<2x96xf32>
    %349 = vector.extract_strided_slice %345 {offsets = [0, 0], sizes = [2, 32], strides = [1, 1]} : vector<2x96xf32> to vector<2x32xf32>
    %350 = vector.extract_strided_slice %348 {offsets = [0, 0], sizes = [2, 32], strides = [1, 1]} : vector<2x96xf32> to vector<2x32xf32>
    %351 = arith.addf %349, %350 : vector<2x32xf32>
    %352 = arith.negf %351 : vector<2x32xf32>
    %353 = math.exp %352 : vector<2x32xf32>
    %cst_67 = arith.constant 1.000000e+00 : f32
    %354 = vector.broadcast %cst_67 : f32 to vector<2x32xf32>
    %355 = arith.addf %354, %353 : vector<2x32xf32>
    %356 = arith.divf %354, %355 : vector<2x32xf32>
    %357 = vector.extract_strided_slice %345 {offsets = [0, 32], sizes = [2, 32], strides = [1, 1]} : vector<2x96xf32> to vector<2x32xf32>
    %358 = vector.extract_strided_slice %348 {offsets = [0, 32], sizes = [2, 32], strides = [1, 1]} : vector<2x96xf32> to vector<2x32xf32>
    %359 = arith.addf %357, %358 : vector<2x32xf32>
    %360 = arith.negf %359 : vector<2x32xf32>
    %361 = math.exp %360 : vector<2x32xf32>
    %cst_68 = arith.constant 1.000000e+00 : f32
    %362 = vector.broadcast %cst_68 : f32 to vector<2x32xf32>
    %363 = arith.addf %362, %361 : vector<2x32xf32>
    %364 = arith.divf %362, %363 : vector<2x32xf32>
    %365 = vector.extract_strided_slice %345 {offsets = [0, 64], sizes = [2, 32], strides = [1, 1]} : vector<2x96xf32> to vector<2x32xf32>
    %366 = vector.extract_strided_slice %348 {offsets = [0, 64], sizes = [2, 32], strides = [1, 1]} : vector<2x96xf32> to vector<2x32xf32>
    %367 = arith.mulf %356, %366 : vector<2x32xf32>
    %368 = arith.addf %365, %367 : vector<2x32xf32>
    %369 = math.tanh %368 : vector<2x32xf32>
    %cst_69 = arith.constant 1.000000e+00 : f32
    %370 = vector.broadcast %cst_69 : f32 to vector<2x32xf32>
    %371 = arith.subf %370, %364 : vector<2x32xf32>
    %372 = arith.mulf %371, %369 : vector<2x32xf32>
    %373 = arith.mulf %364, %340 : vector<2x32xf32>
    %374 = arith.addf %372, %373 : vector<2x32xf32>
    %375 = vector.extract_strided_slice %0 {offsets = [4, 0], sizes = [2, 1], strides = [1, 1]} : vector<16x4xf32> to vector<2x1xf32>
    %376 = vector.broadcast %375 : vector<2x1xf32> to vector<2x96xf32>
    %377 = vector.broadcast %303 : vector<1x96xf32> to vector<2x96xf32>
    %378 = arith.mulf %376, %377 : vector<2x96xf32>
    %379 = arith.addf %302, %378 : vector<2x96xf32>
    %cst_70 = arith.constant dense<0.000000e+00> : vector<2x96xf32>
    %380 = tpu.matmul %374, %304, %cst_70 {dimension_numbers = #tpu.dot_dimension_numbers<[1], [0], [0], [1], [0, 0, 1, 1], [], []>} : vector<2x32xf32>, vector<32x96xf32>, vector<2x96xf32> -> vector<2x96xf32>
    %381 = vector.broadcast %305 : vector<1x96xf32> to vector<2x96xf32>
    %382 = arith.addf %380, %381 : vector<2x96xf32>
    %383 = vector.extract_strided_slice %379 {offsets = [0, 0], sizes = [2, 32], strides = [1, 1]} : vector<2x96xf32> to vector<2x32xf32>
    %384 = vector.extract_strided_slice %382 {offsets = [0, 0], sizes = [2, 32], strides = [1, 1]} : vector<2x96xf32> to vector<2x32xf32>
    %385 = arith.addf %383, %384 : vector<2x32xf32>
    %386 = arith.negf %385 : vector<2x32xf32>
    %387 = math.exp %386 : vector<2x32xf32>
    %cst_71 = arith.constant 1.000000e+00 : f32
    %388 = vector.broadcast %cst_71 : f32 to vector<2x32xf32>
    %389 = arith.addf %388, %387 : vector<2x32xf32>
    %390 = arith.divf %388, %389 : vector<2x32xf32>
    %391 = vector.extract_strided_slice %379 {offsets = [0, 32], sizes = [2, 32], strides = [1, 1]} : vector<2x96xf32> to vector<2x32xf32>
    %392 = vector.extract_strided_slice %382 {offsets = [0, 32], sizes = [2, 32], strides = [1, 1]} : vector<2x96xf32> to vector<2x32xf32>
    %393 = arith.addf %391, %392 : vector<2x32xf32>
    %394 = arith.negf %393 : vector<2x32xf32>
    %395 = math.exp %394 : vector<2x32xf32>
    %cst_72 = arith.constant 1.000000e+00 : f32
    %396 = vector.broadcast %cst_72 : f32 to vector<2x32xf32>
    %397 = arith.addf %396, %395 : vector<2x32xf32>
    %398 = arith.divf %396, %397 : vector<2x32xf32>
    %399 = vector.extract_strided_slice %379 {offsets = [0, 64], sizes = [2, 32], strides = [1, 1]} : vector<2x96xf32> to vector<2x32xf32>
    %400 = vector.extract_strided_slice %382 {offsets = [0, 64], sizes = [2, 32], strides = [1, 1]} : vector<2x96xf32> to vector<2x32xf32>
    %401 = arith.mulf %390, %400 : vector<2x32xf32>
    %402 = arith.addf %399, %401 : vector<2x32xf32>
    %403 = math.tanh %402 : vector<2x32xf32>
    %cst_73 = arith.constant 1.000000e+00 : f32
    %404 = vector.broadcast %cst_73 : f32 to vector<2x32xf32>
    %405 = arith.subf %404, %398 : vector<2x32xf32>
    %406 = arith.mulf %405, %403 : vector<2x32xf32>
    %407 = arith.mulf %398, %374 : vector<2x32xf32>
    %408 = arith.addf %406, %407 : vector<2x32xf32>
    %409 = vector.extract_strided_slice %0 {offsets = [6, 0], sizes = [2, 1], strides = [1, 1]} : vector<16x4xf32> to vector<2x1xf32>
    %410 = vector.broadcast %409 : vector<2x1xf32> to vector<2x96xf32>
    %411 = vector.broadcast %303 : vector<1x96xf32> to vector<2x96xf32>
    %412 = arith.mulf %410, %411 : vector<2x96xf32>
    %413 = arith.addf %302, %412 : vector<2x96xf32>
    %cst_74 = arith.constant dense<0.000000e+00> : vector<2x96xf32>
    %414 = tpu.matmul %408, %304, %cst_74 {dimension_numbers = #tpu.dot_dimension_numbers<[1], [0], [0], [1], [0, 0, 1, 1], [], []>} : vector<2x32xf32>, vector<32x96xf32>, vector<2x96xf32> -> vector<2x96xf32>
    %415 = vector.broadcast %305 : vector<1x96xf32> to vector<2x96xf32>
    %416 = arith.addf %414, %415 : vector<2x96xf32>
    %417 = vector.extract_strided_slice %413 {offsets = [0, 0], sizes = [2, 32], strides = [1, 1]} : vector<2x96xf32> to vector<2x32xf32>
    %418 = vector.extract_strided_slice %416 {offsets = [0, 0], sizes = [2, 32], strides = [1, 1]} : vector<2x96xf32> to vector<2x32xf32>
    %419 = arith.addf %417, %418 : vector<2x32xf32>
    %420 = arith.negf %419 : vector<2x32xf32>
    %421 = math.exp %420 : vector<2x32xf32>
    %cst_75 = arith.constant 1.000000e+00 : f32
    %422 = vector.broadcast %cst_75 : f32 to vector<2x32xf32>
    %423 = arith.addf %422, %421 : vector<2x32xf32>
    %424 = arith.divf %422, %423 : vector<2x32xf32>
    %425 = vector.extract_strided_slice %413 {offsets = [0, 32], sizes = [2, 32], strides = [1, 1]} : vector<2x96xf32> to vector<2x32xf32>
    %426 = vector.extract_strided_slice %416 {offsets = [0, 32], sizes = [2, 32], strides = [1, 1]} : vector<2x96xf32> to vector<2x32xf32>
    %427 = arith.addf %425, %426 : vector<2x32xf32>
    %428 = arith.negf %427 : vector<2x32xf32>
    %429 = math.exp %428 : vector<2x32xf32>
    %cst_76 = arith.constant 1.000000e+00 : f32
    %430 = vector.broadcast %cst_76 : f32 to vector<2x32xf32>
    %431 = arith.addf %430, %429 : vector<2x32xf32>
    %432 = arith.divf %430, %431 : vector<2x32xf32>
    %433 = vector.extract_strided_slice %413 {offsets = [0, 64], sizes = [2, 32], strides = [1, 1]} : vector<2x96xf32> to vector<2x32xf32>
    %434 = vector.extract_strided_slice %416 {offsets = [0, 64], sizes = [2, 32], strides = [1, 1]} : vector<2x96xf32> to vector<2x32xf32>
    %435 = arith.mulf %424, %434 : vector<2x32xf32>
    %436 = arith.addf %433, %435 : vector<2x32xf32>
    %437 = math.tanh %436 : vector<2x32xf32>
    %cst_77 = arith.constant 1.000000e+00 : f32
    %438 = vector.broadcast %cst_77 : f32 to vector<2x32xf32>
    %439 = arith.subf %438, %432 : vector<2x32xf32>
    %440 = arith.mulf %439, %437 : vector<2x32xf32>
    %441 = arith.mulf %432, %408 : vector<2x32xf32>
    %442 = arith.addf %440, %441 : vector<2x32xf32>
    %443 = vector.extract_strided_slice %0 {offsets = [8, 0], sizes = [2, 1], strides = [1, 1]} : vector<16x4xf32> to vector<2x1xf32>
    %444 = vector.broadcast %443 : vector<2x1xf32> to vector<2x96xf32>
    %445 = vector.broadcast %303 : vector<1x96xf32> to vector<2x96xf32>
    %446 = arith.mulf %444, %445 : vector<2x96xf32>
    %447 = arith.addf %302, %446 : vector<2x96xf32>
    %cst_78 = arith.constant dense<0.000000e+00> : vector<2x96xf32>
    %448 = tpu.matmul %442, %304, %cst_78 {dimension_numbers = #tpu.dot_dimension_numbers<[1], [0], [0], [1], [0, 0, 1, 1], [], []>} : vector<2x32xf32>, vector<32x96xf32>, vector<2x96xf32> -> vector<2x96xf32>
    %449 = vector.broadcast %305 : vector<1x96xf32> to vector<2x96xf32>
    %450 = arith.addf %448, %449 : vector<2x96xf32>
    %451 = vector.extract_strided_slice %447 {offsets = [0, 0], sizes = [2, 32], strides = [1, 1]} : vector<2x96xf32> to vector<2x32xf32>
    %452 = vector.extract_strided_slice %450 {offsets = [0, 0], sizes = [2, 32], strides = [1, 1]} : vector<2x96xf32> to vector<2x32xf32>
    %453 = arith.addf %451, %452 : vector<2x32xf32>
    %454 = arith.negf %453 : vector<2x32xf32>
    %455 = math.exp %454 : vector<2x32xf32>
    %cst_79 = arith.constant 1.000000e+00 : f32
    %456 = vector.broadcast %cst_79 : f32 to vector<2x32xf32>
    %457 = arith.addf %456, %455 : vector<2x32xf32>
    %458 = arith.divf %456, %457 : vector<2x32xf32>
    %459 = vector.extract_strided_slice %447 {offsets = [0, 32], sizes = [2, 32], strides = [1, 1]} : vector<2x96xf32> to vector<2x32xf32>
    %460 = vector.extract_strided_slice %450 {offsets = [0, 32], sizes = [2, 32], strides = [1, 1]} : vector<2x96xf32> to vector<2x32xf32>
    %461 = arith.addf %459, %460 : vector<2x32xf32>
    %462 = arith.negf %461 : vector<2x32xf32>
    %463 = math.exp %462 : vector<2x32xf32>
    %cst_80 = arith.constant 1.000000e+00 : f32
    %464 = vector.broadcast %cst_80 : f32 to vector<2x32xf32>
    %465 = arith.addf %464, %463 : vector<2x32xf32>
    %466 = arith.divf %464, %465 : vector<2x32xf32>
    %467 = vector.extract_strided_slice %447 {offsets = [0, 64], sizes = [2, 32], strides = [1, 1]} : vector<2x96xf32> to vector<2x32xf32>
    %468 = vector.extract_strided_slice %450 {offsets = [0, 64], sizes = [2, 32], strides = [1, 1]} : vector<2x96xf32> to vector<2x32xf32>
    %469 = arith.mulf %458, %468 : vector<2x32xf32>
    %470 = arith.addf %467, %469 : vector<2x32xf32>
    %471 = math.tanh %470 : vector<2x32xf32>
    %cst_81 = arith.constant 1.000000e+00 : f32
    %472 = vector.broadcast %cst_81 : f32 to vector<2x32xf32>
    %473 = arith.subf %472, %466 : vector<2x32xf32>
    %474 = arith.mulf %473, %471 : vector<2x32xf32>
    %475 = arith.mulf %466, %442 : vector<2x32xf32>
    %476 = arith.addf %474, %475 : vector<2x32xf32>
    %477 = vector.extract_strided_slice %0 {offsets = [10, 0], sizes = [2, 1], strides = [1, 1]} : vector<16x4xf32> to vector<2x1xf32>
    %478 = vector.broadcast %477 : vector<2x1xf32> to vector<2x96xf32>
    %479 = vector.broadcast %303 : vector<1x96xf32> to vector<2x96xf32>
    %480 = arith.mulf %478, %479 : vector<2x96xf32>
    %481 = arith.addf %302, %480 : vector<2x96xf32>
    %cst_82 = arith.constant dense<0.000000e+00> : vector<2x96xf32>
    %482 = tpu.matmul %476, %304, %cst_82 {dimension_numbers = #tpu.dot_dimension_numbers<[1], [0], [0], [1], [0, 0, 1, 1], [], []>} : vector<2x32xf32>, vector<32x96xf32>, vector<2x96xf32> -> vector<2x96xf32>
    %483 = vector.broadcast %305 : vector<1x96xf32> to vector<2x96xf32>
    %484 = arith.addf %482, %483 : vector<2x96xf32>
    %485 = vector.extract_strided_slice %481 {offsets = [0, 0], sizes = [2, 32], strides = [1, 1]} : vector<2x96xf32> to vector<2x32xf32>
    %486 = vector.extract_strided_slice %484 {offsets = [0, 0], sizes = [2, 32], strides = [1, 1]} : vector<2x96xf32> to vector<2x32xf32>
    %487 = arith.addf %485, %486 : vector<2x32xf32>
    %488 = arith.negf %487 : vector<2x32xf32>
    %489 = math.exp %488 : vector<2x32xf32>
    %cst_83 = arith.constant 1.000000e+00 : f32
    %490 = vector.broadcast %cst_83 : f32 to vector<2x32xf32>
    %491 = arith.addf %490, %489 : vector<2x32xf32>
    %492 = arith.divf %490, %491 : vector<2x32xf32>
    %493 = vector.extract_strided_slice %481 {offsets = [0, 32], sizes = [2, 32], strides = [1, 1]} : vector<2x96xf32> to vector<2x32xf32>
    %494 = vector.extract_strided_slice %484 {offsets = [0, 32], sizes = [2, 32], strides = [1, 1]} : vector<2x96xf32> to vector<2x32xf32>
    %495 = arith.addf %493, %494 : vector<2x32xf32>
    %496 = arith.negf %495 : vector<2x32xf32>
    %497 = math.exp %496 : vector<2x32xf32>
    %cst_84 = arith.constant 1.000000e+00 : f32
    %498 = vector.broadcast %cst_84 : f32 to vector<2x32xf32>
    %499 = arith.addf %498, %497 : vector<2x32xf32>
    %500 = arith.divf %498, %499 : vector<2x32xf32>
    %501 = vector.extract_strided_slice %481 {offsets = [0, 64], sizes = [2, 32], strides = [1, 1]} : vector<2x96xf32> to vector<2x32xf32>
    %502 = vector.extract_strided_slice %484 {offsets = [0, 64], sizes = [2, 32], strides = [1, 1]} : vector<2x96xf32> to vector<2x32xf32>
    %503 = arith.mulf %492, %502 : vector<2x32xf32>
    %504 = arith.addf %501, %503 : vector<2x32xf32>
    %505 = math.tanh %504 : vector<2x32xf32>
    %cst_85 = arith.constant 1.000000e+00 : f32
    %506 = vector.broadcast %cst_85 : f32 to vector<2x32xf32>
    %507 = arith.subf %506, %500 : vector<2x32xf32>
    %508 = arith.mulf %507, %505 : vector<2x32xf32>
    %509 = arith.mulf %500, %476 : vector<2x32xf32>
    %510 = arith.addf %508, %509 : vector<2x32xf32>
    %511 = vector.extract_strided_slice %0 {offsets = [12, 0], sizes = [2, 1], strides = [1, 1]} : vector<16x4xf32> to vector<2x1xf32>
    %512 = vector.broadcast %511 : vector<2x1xf32> to vector<2x96xf32>
    %513 = vector.broadcast %303 : vector<1x96xf32> to vector<2x96xf32>
    %514 = arith.mulf %512, %513 : vector<2x96xf32>
    %515 = arith.addf %302, %514 : vector<2x96xf32>
    %cst_86 = arith.constant dense<0.000000e+00> : vector<2x96xf32>
    %516 = tpu.matmul %510, %304, %cst_86 {dimension_numbers = #tpu.dot_dimension_numbers<[1], [0], [0], [1], [0, 0, 1, 1], [], []>} : vector<2x32xf32>, vector<32x96xf32>, vector<2x96xf32> -> vector<2x96xf32>
    %517 = vector.broadcast %305 : vector<1x96xf32> to vector<2x96xf32>
    %518 = arith.addf %516, %517 : vector<2x96xf32>
    %519 = vector.extract_strided_slice %515 {offsets = [0, 0], sizes = [2, 32], strides = [1, 1]} : vector<2x96xf32> to vector<2x32xf32>
    %520 = vector.extract_strided_slice %518 {offsets = [0, 0], sizes = [2, 32], strides = [1, 1]} : vector<2x96xf32> to vector<2x32xf32>
    %521 = arith.addf %519, %520 : vector<2x32xf32>
    %522 = arith.negf %521 : vector<2x32xf32>
    %523 = math.exp %522 : vector<2x32xf32>
    %cst_87 = arith.constant 1.000000e+00 : f32
    %524 = vector.broadcast %cst_87 : f32 to vector<2x32xf32>
    %525 = arith.addf %524, %523 : vector<2x32xf32>
    %526 = arith.divf %524, %525 : vector<2x32xf32>
    %527 = vector.extract_strided_slice %515 {offsets = [0, 32], sizes = [2, 32], strides = [1, 1]} : vector<2x96xf32> to vector<2x32xf32>
    %528 = vector.extract_strided_slice %518 {offsets = [0, 32], sizes = [2, 32], strides = [1, 1]} : vector<2x96xf32> to vector<2x32xf32>
    %529 = arith.addf %527, %528 : vector<2x32xf32>
    %530 = arith.negf %529 : vector<2x32xf32>
    %531 = math.exp %530 : vector<2x32xf32>
    %cst_88 = arith.constant 1.000000e+00 : f32
    %532 = vector.broadcast %cst_88 : f32 to vector<2x32xf32>
    %533 = arith.addf %532, %531 : vector<2x32xf32>
    %534 = arith.divf %532, %533 : vector<2x32xf32>
    %535 = vector.extract_strided_slice %515 {offsets = [0, 64], sizes = [2, 32], strides = [1, 1]} : vector<2x96xf32> to vector<2x32xf32>
    %536 = vector.extract_strided_slice %518 {offsets = [0, 64], sizes = [2, 32], strides = [1, 1]} : vector<2x96xf32> to vector<2x32xf32>
    %537 = arith.mulf %526, %536 : vector<2x32xf32>
    %538 = arith.addf %535, %537 : vector<2x32xf32>
    %539 = math.tanh %538 : vector<2x32xf32>
    %cst_89 = arith.constant 1.000000e+00 : f32
    %540 = vector.broadcast %cst_89 : f32 to vector<2x32xf32>
    %541 = arith.subf %540, %534 : vector<2x32xf32>
    %542 = arith.mulf %541, %539 : vector<2x32xf32>
    %543 = arith.mulf %534, %510 : vector<2x32xf32>
    %544 = arith.addf %542, %543 : vector<2x32xf32>
    %545 = vector.extract_strided_slice %0 {offsets = [14, 0], sizes = [2, 1], strides = [1, 1]} : vector<16x4xf32> to vector<2x1xf32>
    %546 = vector.broadcast %545 : vector<2x1xf32> to vector<2x96xf32>
    %547 = vector.broadcast %303 : vector<1x96xf32> to vector<2x96xf32>
    %548 = arith.mulf %546, %547 : vector<2x96xf32>
    %549 = arith.addf %302, %548 : vector<2x96xf32>
    %cst_90 = arith.constant dense<0.000000e+00> : vector<2x96xf32>
    %550 = tpu.matmul %544, %304, %cst_90 {dimension_numbers = #tpu.dot_dimension_numbers<[1], [0], [0], [1], [0, 0, 1, 1], [], []>} : vector<2x32xf32>, vector<32x96xf32>, vector<2x96xf32> -> vector<2x96xf32>
    %551 = vector.broadcast %305 : vector<1x96xf32> to vector<2x96xf32>
    %552 = arith.addf %550, %551 : vector<2x96xf32>
    %553 = vector.extract_strided_slice %549 {offsets = [0, 0], sizes = [2, 32], strides = [1, 1]} : vector<2x96xf32> to vector<2x32xf32>
    %554 = vector.extract_strided_slice %552 {offsets = [0, 0], sizes = [2, 32], strides = [1, 1]} : vector<2x96xf32> to vector<2x32xf32>
    %555 = arith.addf %553, %554 : vector<2x32xf32>
    %556 = arith.negf %555 : vector<2x32xf32>
    %557 = math.exp %556 : vector<2x32xf32>
    %cst_91 = arith.constant 1.000000e+00 : f32
    %558 = vector.broadcast %cst_91 : f32 to vector<2x32xf32>
    %559 = arith.addf %558, %557 : vector<2x32xf32>
    %560 = arith.divf %558, %559 : vector<2x32xf32>
    %561 = vector.extract_strided_slice %549 {offsets = [0, 32], sizes = [2, 32], strides = [1, 1]} : vector<2x96xf32> to vector<2x32xf32>
    %562 = vector.extract_strided_slice %552 {offsets = [0, 32], sizes = [2, 32], strides = [1, 1]} : vector<2x96xf32> to vector<2x32xf32>
    %563 = arith.addf %561, %562 : vector<2x32xf32>
    %564 = arith.negf %563 : vector<2x32xf32>
    %565 = math.exp %564 : vector<2x32xf32>
    %cst_92 = arith.constant 1.000000e+00 : f32
    %566 = vector.broadcast %cst_92 : f32 to vector<2x32xf32>
    %567 = arith.addf %566, %565 : vector<2x32xf32>
    %568 = arith.divf %566, %567 : vector<2x32xf32>
    %569 = vector.extract_strided_slice %549 {offsets = [0, 64], sizes = [2, 32], strides = [1, 1]} : vector<2x96xf32> to vector<2x32xf32>
    %570 = vector.extract_strided_slice %552 {offsets = [0, 64], sizes = [2, 32], strides = [1, 1]} : vector<2x96xf32> to vector<2x32xf32>
    %571 = arith.mulf %560, %570 : vector<2x32xf32>
    %572 = arith.addf %569, %571 : vector<2x32xf32>
    %573 = math.tanh %572 : vector<2x32xf32>
    %cst_93 = arith.constant 1.000000e+00 : f32
    %574 = vector.broadcast %cst_93 : f32 to vector<2x32xf32>
    %575 = arith.subf %574, %568 : vector<2x32xf32>
    %576 = arith.mulf %575, %573 : vector<2x32xf32>
    %577 = arith.mulf %568, %544 : vector<2x32xf32>
    %578 = arith.addf %576, %577 : vector<2x32xf32>
    %579 = tpu.concatenate %340, %374, %408, %442, %476, %510, %544, %578 in 0 : vector<2x32xf32>, vector<2x32xf32>, vector<2x32xf32>, vector<2x32xf32>, vector<2x32xf32>, vector<2x32xf32>, vector<2x32xf32>, vector<2x32xf32> -> vector<16x32xf32>
    %c0_94 = arith.constant 0 : index
    %c0_95 = arith.constant 0 : index
    %580 = vector.load %arg12[%c0_94, %c0_95] : memref<32x1xf32, #tpu.memory_space<vmem>>, vector<32x1xf32>
    %cst_96 = arith.constant dense<0.000000e+00> : vector<16x1xf32>
    %581 = tpu.matmul %579, %580, %cst_96 {dimension_numbers = #tpu.dot_dimension_numbers<[1], [0], [0], [1], [0, 0, 1, 1], [], []>} : vector<16x32xf32>, vector<32x1xf32>, vector<16x1xf32> -> vector<16x1xf32>
    %c0_97 = arith.constant 0 : index
    %c0_98 = arith.constant 0 : index
    %582 = vector.load %arg13[%c0_97, %c0_98] : memref<1x1xf32, #tpu.memory_space<vmem>>, vector<1x1xf32>
    %583 = vector.broadcast %582 : vector<1x1xf32> to vector<16x1xf32>
    %584 = arith.addf %581, %583 : vector<16x1xf32>
    %585 = vector.extract_strided_slice %584 {offsets = [0, 0], sizes = [2, 1], strides = [1, 1]} : vector<16x1xf32> to vector<2x1xf32>
    %586 = vector.extract_strided_slice %584 {offsets = [2, 0], sizes = [2, 1], strides = [1, 1]} : vector<16x1xf32> to vector<2x1xf32>
    %587 = vector.extract_strided_slice %584 {offsets = [4, 0], sizes = [2, 1], strides = [1, 1]} : vector<16x1xf32> to vector<2x1xf32>
    %588 = vector.extract_strided_slice %584 {offsets = [6, 0], sizes = [2, 1], strides = [1, 1]} : vector<16x1xf32> to vector<2x1xf32>
    %589 = vector.extract_strided_slice %584 {offsets = [8, 0], sizes = [2, 1], strides = [1, 1]} : vector<16x1xf32> to vector<2x1xf32>
    %590 = vector.extract_strided_slice %584 {offsets = [10, 0], sizes = [2, 1], strides = [1, 1]} : vector<16x1xf32> to vector<2x1xf32>
    %591 = vector.extract_strided_slice %584 {offsets = [12, 0], sizes = [2, 1], strides = [1, 1]} : vector<16x1xf32> to vector<2x1xf32>
    %592 = vector.extract_strided_slice %584 {offsets = [14, 0], sizes = [2, 1], strides = [1, 1]} : vector<16x1xf32> to vector<2x1xf32>
    %593 = tpu.concatenate %585, %586, %587, %588, %589, %590, %591, %592 in 1 : vector<2x1xf32>, vector<2x1xf32>, vector<2x1xf32>, vector<2x1xf32>, vector<2x1xf32>, vector<2x1xf32>, vector<2x1xf32>, vector<2x1xf32> -> vector<2x8xf32>
    %c0_99 = arith.constant 0 : index
    %c0_100 = arith.constant 0 : index
    %594 = vector.load %arg14[%c0_99, %c0_100] : memref<2x8xf32, #tpu.memory_space<vmem>>, vector<2x8xf32>
    tpu.vector_store %arg14[%c0_99, %c0_100], %593 {strides = array<i32>} : memref<2x8xf32, #tpu.memory_space<vmem>>, vector<2x8xf32>,
    return
  }
}

</mosaic_0001>

<llo_original>
// kernel: gruae_forward.1
$region0: #{gruae_forward.1}
  #allocation0 [shape = 'u32[]', space=smem, size = 0x4, offset = 0x4, fixed_abs, tag = 'smem constant byte address 0x4 - core index']
  #allocation1 [shape = 'u32[72,128]{1,0:T(1,128)}', space=vmem, size = 0x9000, scoped, tag = 'internal scratch']
  #allocation2 [shape = 'f32[1,1]{1,0:T(1,128)S(1)}', space=vmem, size = 0x200, scoped, tag = 'scoped memory for gruae_forward.1']
  %s0 = inlined_call_operand.vmem [shape: f32[16,4], index: 0, kind: input, shape index: {}]
  %s1 = inlined_call_operand.vmem [shape: s32[2,1], index: 1, kind: input, shape index: {}]
  %s2 = inlined_call_operand.vmem [shape: f32[4,96], index: 2, kind: input, shape index: {}]
  %s3 = inlined_call_operand.vmem [shape: f32[32,96], index: 3, kind: input, shape index: {}]
  %s4 = inlined_call_operand.vmem [shape: f32[1,96], index: 4, kind: input, shape index: {}]
  %s5 = inlined_call_operand.vmem [shape: f32[1,96], index: 5, kind: input, shape index: {}]
  %s6 = inlined_call_operand.vmem [shape: f32[32,4], index: 6, kind: input, shape index: {}]
  %s7 = inlined_call_operand.vmem [shape: f32[1,4], index: 7, kind: input, shape index: {}]
  %s8 = inlined_call_operand.vmem [shape: f32[5,96], index: 8, kind: input, shape index: {}]
  %s9 = inlined_call_operand.vmem [shape: f32[32,96], index: 9, kind: input, shape index: {}]
  %s10 = inlined_call_operand.vmem [shape: f32[1,96], index: 10, kind: input, shape index: {}]
  %s11 = inlined_call_operand.vmem [shape: f32[1,96], index: 11, kind: input, shape index: {}]
  %s12 = inlined_call_operand.vmem [shape: f32[32,1], index: 12, kind: input, shape index: {}]
  %s13 = inlined_call_operand.<no memory space> [shape: f32[1,1], index: 13, kind: input, shape index: {}]
  %s14 = inlined_call_operand.hbm [shape: f32[2,8], index: 14, kind: output, shape index: {0}]
  %s15 = inlined_call_operand.hbm [shape: f32[2,4], index: 15, kind: output, shape index: {1}]
  %16 = xla_tuple %s14, %s15
  %s17 = sld [smem:[#allocation0]]
  $region74: #{gruae_forward.1} parent=0
    _
  %s19 = ssub.s32 1, %s17
  %s20 = scalar_select 0, %s19, %s17
  %v21 = vstv %s13
  %22 = vst [vmem:[#allocation2] sm:$0x1] %v21
  $region1: #{gruae_forward.1} parent=0
    #allocation3 [shape = 'u8[1024]{0}', space=vmem, size = 0x400, scoped, tag = 'output window, operand 0, single buffered']
    #allocation4 [shape = 's32[1]{0}', space=sflag, size = 0x4, scoped, tag = 'scoped memory for gruae_forward.1']
    #allocation5 [shape = 'u8[1024]{0}', space=vmem, size = 0x400, scoped, tag = 'output window, operand 1, single buffered']
    #allocation6 [shape = 's32[1]{0}', space=sflag, size = 0x4, scoped, tag = 'scoped memory for gruae_forward.1']
    %23 = vsyncpa [#allocation4], 0
    %24 = vsyncpa [#allocation6], 0
    // Predicated region
    $region2: #{gruae_forward.1} parent=1 // pred_check
      _
    $region3: #{gruae_forward.1} parent=1 // pred_check_branch
      %26 = sbr.rel (0) target = $region5
    $region4: #{gruae_forward.1} parent=1 // pred_region
      _
    $region5: #{gruae_forward.1} parent=1 // pred_fallthru
      _
    // Predicated region
    $region6: #{gruae_forward.1} parent=1 // pred_check
      _
    $region7: #{gruae_forward.1} parent=1 // pred_check_branch
      %28 = sbr.rel (0) target = $region9
    $region8: #{gruae_forward.1} parent=1 // pred_region
      _
    $region9: #{gruae_forward.1} parent=1 // pred_fallthru
      _
    // Predicated region
    $region10: #{gruae_forward.1} parent=1 // pred_check
      _
    $region11: #{gruae_forward.1} parent=1 // pred_check_branch
      %30 = sbr.rel (0) target = $region13
    $region12: #{gruae_forward.1} parent=1 // pred_region
      _
    $region13: #{gruae_forward.1} parent=1 // pred_fallthru
      _
    // Predicated region
    $region14: #{gruae_forward.1} parent=1 // pred_check
      _
    $region15: #{gruae_forward.1} parent=1 // pred_check_branch
      %32 = sbr.rel (0) target = $region17
    $region16: #{gruae_forward.1} parent=1 // pred_region
      _
    $region17: #{gruae_forward.1} parent=1 // pred_fallthru
      _
    // Predicated region
    $region18: #{gruae_forward.1} parent=1 // pred_check
      _
    $region19: #{gruae_forward.1} parent=1 // pred_check_branch
      %34 = sbr.rel (0) target = $region21
    $region20: #{gruae_forward.1} parent=1 // pred_region
      _
    $region21: #{gruae_forward.1} parent=1 // pred_fallthru
      _
    // Predicated region
    $region22: #{gruae_forward.1} parent=1 // pred_check
      _
    $region23: #{gruae_forward.1} parent=1 // pred_check_branch
      %36 = sbr.rel (0) target = $region25
    $region24: #{gruae_forward.1} parent=1 // pred_region
      _
    $region25: #{gruae_forward.1} parent=1 // pred_fallthru
      _
    // Predicated region
    $region26: #{gruae_forward.1} parent=1 // pred_check
      _
    $region27: #{gruae_forward.1} parent=1 // pred_check_branch
      %38 = sbr.rel (0) target = $region29
    $region28: #{gruae_forward.1} parent=1 // pred_region
      _
    $region29: #{gruae_forward.1} parent=1 // pred_fallthru
      _
    // Predicated region
    $region30: #{gruae_forward.1} parent=1 // pred_check
      _
    $region31: #{gruae_forward.1} parent=1 // pred_check_branch
      %40 = sbr.rel (0) target = $region33
    $region32: #{gruae_forward.1} parent=1 // pred_region
      _
    $region33: #{gruae_forward.1} parent=1 // pred_fallthru
      _
    // Predicated region
    $region34: #{gruae_forward.1} parent=1 // pred_check
      _
    $region35: #{gruae_forward.1} parent=1 // pred_check_branch
      %42 = sbr.rel (0) target = $region37
    $region36: #{gruae_forward.1} parent=1 // pred_region
      _
    $region37: #{gruae_forward.1} parent=1 // pred_fallthru
      _
    // Predicated region
    $region38: #{gruae_forward.1} parent=1 // pred_check
      _
    $region39: #{gruae_forward.1} parent=1 // pred_check_branch
      %44 = sbr.rel (0) target = $region41
    $region40: #{gruae_forward.1} parent=1 // pred_region
      _
    $region41: #{gruae_forward.1} parent=1 // pred_fallthru
      _
    // Predicated region
    $region42: #{gruae_forward.1} parent=1 // pred_check
      _
    $region43: #{gruae_forward.1} parent=1 // pred_check_branch
      %46 = sbr.rel (0) target = $region45
    $region44: #{gruae_forward.1} parent=1 // pred_region
      _
    $region45: #{gruae_forward.1} parent=1 // pred_fallthru
      _
    // Predicated region
    $region46: #{gruae_forward.1} parent=1 // pred_check
      _
    $region47: #{gruae_forward.1} parent=1 // pred_check_branch
      %48 = sbr.rel (0) target = $region49
    $region48: #{gruae_forward.1} parent=1 // pred_region
      _
    $region49: #{gruae_forward.1} parent=1 // pred_fallthru
      _
    // Predicated region
    $region50: #{gruae_forward.1} parent=1 // pred_check
      _
    $region51: #{gruae_forward.1} parent=1 // pred_check_branch
      %50 = sbr.rel (0) target = $region53
    $region52: #{gruae_forward.1} parent=1 // pred_region
      _
    $region53: #{gruae_forward.1} parent=1 // pred_fallthru
      _
    // Predicated region
    $region54: #{gruae_forward.1} parent=1 // pred_check
      _
    $region55: #{gruae_forward.1} parent=1 // pred_check_branch
      %52 = sbr.rel (0) target = $region57
    $region56: #{gruae_forward.1} parent=1 // pred_region
      _
    $region57: #{gruae_forward.1} parent=1 // pred_fallthru
      _
    %v53 = vld [vmem:[%s0] sm:$0xff]
    %v54 = vld [vmem:[%s0 + $0x8] sm:$0xff]
    %v55 = vld [vmem:[%s2] sm:$0xf]
    %v56 = vld [vmem:[%s4] sm:$0x1]
    %v58 = vperm.slane %v56, 0
    %vm60 = vcmask 31744
    %v62 = vsel %vm60, %v53, 0
    %v65 = vsel %vm60, %v54, 0
    %vm67 = vcmask 1043456
    %v69 = vsel %vm67, %v55, 0
    %71 = vmatpush.msra.mxu0 0.0
    %72 = vmatpush.msra.mxu0 0.0
    %73 = vmatpush.msra.mxu0 0.0
    %74 = vmatpush.msra.mxu0 0.0
    %75 = vmatpush.msra.mxu0 0.0
    %76 = vmatpush.msra.mxu0 0.0
    %77 = vmatpush.msra.mxu0 0.0
    %78 = vmatpush.msra.mxu0 0.0
    %79 = vmatpush.msra.mxu0 0.0
    %80 = vmatpush.msra.mxu0 0.0
    %81 = vmatpush.msra.mxu0 0.0
    %82 = vmatpush.msra.mxu0 0.0
    %83 = vmatpush.msra.mxu0 0.0
    %84 = vmatpush.msra.mxu0 0.0
    %85 = vmatpush.msra.mxu0 0.0
    %86 = vmatpush.msra.mxu0 %v69
    %87 = vmatmul.f32.gmra.mxu0 %v62
    %v88 = vpop.f32.mrf.mxu0
    %v89 = vadd.f32 %v58, %v88
    %90 = vmatmul.f32.gmra.mxu0 %v65
    %v91 = vpop.f32.mrf.mxu0
    %v92 = vadd.f32 %v58, %v91
    %93 = vdwg.mxu0
    %v94 = vld [vmem:[%s3] sm:$0xff]
    %v95 = vld [vmem:[%s3 + $0x8] sm:$0xff]
    %v96 = vld [vmem:[%s3 + $0x10] sm:$0xff]
    %v97 = vld [vmem:[%s3 + $0x18] sm:$0xff]
    %v98 = vld [vmem:[%s5] sm:$0x1]
    %v99 = vld [vmem:[%s1] sm:$0x3]
    %v101 = vperm.slane %v98, 0
    %vm103 = vcmask 261120
    %v105 = vsel %vm103, 0.0, 0
    %107 = vmatpush.msra.mxu0 0.0
    %108 = vmatpush.msra.mxu0 0.0
    %109 = vmatpush.msra.mxu0 0.0
    %110 = vmatpush.msra.mxu0 0.0
    %111 = vmatpush.msra.mxu0 0.0
    %112 = vmatpush.msra.mxu0 0.0
    %113 = vmatpush.msra.mxu0 0.0
    %114 = vmatpush.msra.mxu0 0.0
    %115 = vmatpush.msra.mxu0 0.0
    %116 = vmatpush.msra.mxu0 0.0
    %117 = vmatpush.msra.mxu0 0.0
    %118 = vmatpush.msra.mxu0 0.0
    %119 = vmatpush.msra.mxu0 %v97
    %120 = vmatpush.msra.mxu0 %v96
    %121 = vmatpush.msra.mxu0 %v95
    %122 = vmatpush.msra.mxu0 %v94
    %123 = vmatmul.f32.gmra.mxu0 %v105
    %v124 = vpop.f32.mrf.mxu0
    %v125 = vadd.f32 %v101, %v124
    %126 = vdwg.mxu0
    %v127 = vadd.f32 %v89, %v125
    %v128 = vxor.u32 %v127, 2147483648
    %v129 = vmul.f32 %v128, 1.442695
    %v130 = vpow.pop %v129
    %v131 = vadd.f32 %v130, 1.0
    %v132 = vrcp.pop %v131
    %v133 = vmul.f32 %v131, %v132
    %v134 = vsub.f32 1.0, %v133
    %v135 = vmul.f32 %v132, %v134
    %v136 = vadd.f32 %v132, %v135
    %vm137 = vweird.f32 %v131
    %vm138 = vweird.f32 %v132
    %vm139 = vmor %vm137, %vm138
    %v140 = vsel %vm139, %v132, %v136
    %v141 = vand.u32 2147483647, %v131
    %vm142 = vcmp.eq.f32.partialorder %v141, 8.507059e+37
    %v143 = vand.u32 %v131, 2147483648
    %v144 = vor.u32 1.1754944e-38, %v143
    %v145 = vsel %vm142, %v144, %v140
    %v146 = vmul.f32 1.0, %v145
    %148 = vrot.lane.b32.xlu0 %v125, 64
    %v149 = vpop.permute.xlu0 %148
    %v151 = vmul.f32 %v146, %v149
    %153 = vrot.lane.b32.xlu0 %v151, 64
    %v154 = vpop.permute.xlu0 %153
    %v156 = vadd.f32 %v89, %v154
    %v157 = vtanh.pop %v156
    %v158 = vsub.f32 1.0, %v146
    %160 = vrot.lane.b32.xlu0 %v157, 96
    %v161 = vpop.permute.xlu0 %160
    %v163 = vmul.f32 %v158, %v161
    %v164 = vmul.f32 %v146, 0.0
    %v165 = vadd.f32 %v163, %v164
    %vm166 = vcmp.eq.s32.totalorder %v99, 0
    %v167 = vsel %vm166, 1, 0
    %168 = vset.pattern.permute.xlu0 0
    %169 = vperm.xlu0 %168, %v167
    %v170 = vpop.permute.xlu0 %169
    %vm171 = vcmp.eq.s32.totalorder %v170, 1
    %v172 = vsel %vm171, %v165, 0.0
    %174 = vrot.lane.b32.xlu0 %v165, 96
    %v175 = vpop.permute.xlu0 %174
    %v176 = vsel %vm103, %v175, 0
    %178 = vmatpush.msra.mxu0 0.0
    %179 = vmatpush.msra.mxu0 0.0
    %180 = vmatpush.msra.mxu0 0.0
    %181 = vmatpush.msra.mxu0 0.0
    %182 = vmatpush.msra.mxu0 0.0
    %183 = vmatpush.msra.mxu0 0.0
    %184 = vmatpush.msra.mxu0 0.0
    %185 = vmatpush.msra.mxu0 0.0
    %186 = vmatpush.msra.mxu0 0.0
    %187 = vmatpush.msra.mxu0 0.0
    %188 = vmatpush.msra.mxu0 0.0
    %189 = vmatpush.msra.mxu0 0.0
    %190 = vmatpush.msra.mxu0 %v97
    %191 = vmatpush.msra.mxu0 %v96
    %192 = vmatpush.msra.mxu0 %v95
    %193 = vmatpush.msra.mxu0 %v94
    %194 = vmatmul.f32.gmra.mxu0 %v176
    %v195 = vpop.f32.mrf.mxu0
    %v196 = vadd.f32 %v101, %v195
    %197 = vdwg.mxu0
    %v199 = vrot.slane %v196, 6
    %v201 = vadd.f32 %v89, %v199
    %v202 = vxor.u32 %v201, 2147483648
    %v203 = vmul.f32 %v202, 1.442695
    %v204 = vpow.pop %v203
    %v205 = vadd.f32 %v204, 1.0
    %v206 = vrcp.pop %v205
    %v207 = vmul.f32 %v205, %v206
    %v208 = vsub.f32 1.0, %v207
    %v209 = vmul.f32 %v206, %v208
    %v210 = vadd.f32 %v206, %v209
    %vm211 = vweird.f32 %v205
    %vm212 = vweird.f32 %v206
    %vm213 = vmor %vm211, %vm212
    %v214 = vsel %vm213, %v206, %v210
    %v215 = vand.u32 2147483647, %v205
    %vm216 = vcmp.eq.f32.partialorder %v215, 8.507059e+37
    %v217 = vand.u32 %v205, 2147483648
    %v218 = vor.u32 1.1754944e-38, %v217
    %v219 = vsel %vm216, %v218, %v214
    %v220 = vmul.f32 1.0, %v219
    %221 = vrot.lane.b32.xlu0 %v199, 64
    %v222 = vpop.permute.xlu0 %221
    %v224 = vmul.f32 %v220, %v222
    %226 = vrot.lane.b32.xlu0 %v224, 64
    %v227 = vpop.permute.xlu0 %226
    %v229 = vadd.f32 %v89, %v227
    %v230 = vtanh.pop %v229
    %v231 = vsub.f32 1.0, %v220
    %233 = vrot.lane.b32.xlu0 %v230, 96
    %v234 = vpop.permute.xlu0 %233
    %v236 = vmul.f32 %v231, %v234
    %v237 = vrot.slane %v165, 6
    %v239 = vmul.f32 %v220, %v237
    %v240 = vadd.f32 %v236, %v239
    %vm241 = vcmp.eq.s32.totalorder %v99, 1
    %v242 = vsel %vm241, 1, 0
    %243 = vset.pattern.permute.xlu0 0
    %244 = vperm.xlu0 %243, %v242
    %v245 = vpop.permute.xlu0 %244
    %vm246 = vcmp.eq.s32.totalorder %v245, 1
    %v248 = vrot.slane %v240, 2
    %249 = vrot.lane.b32.xlu0 %v248, 96
    %v250 = vpop.permute.xlu0 %249
    %253 = vrot.lane.b32.xlu0 %v172, 96
    %v254 = vpop.permute.xlu0 %253
    %v256 = vsel %vm246, %v250, %v254
    %v257 = vsel %vm103, %v250, 0
    %259 = vmatpush.msra.mxu0 0.0
    %260 = vmatpush.msra.mxu0 0.0
    %261 = vmatpush.msra.mxu0 0.0
    %262 = vmatpush.msra.mxu0 0.0
    %263 = vmatpush.msra.mxu0 0.0
    %264 = vmatpush.msra.mxu0 0.0
    %265 = vmatpush.msra.mxu0 0.0
    %266 = vmatpush.msra.mxu0 0.0
    %267 = vmatpush.msra.mxu0 0.0
    %268 = vmatpush.msra.mxu0 0.0
    %269 = vmatpush.msra.mxu0 0.0
    %270 = vmatpush.msra.mxu0 0.0
    %271 = vmatpush.msra.mxu0 %v97
    %272 = vmatpush.msra.mxu0 %v96
    %273 = vmatpush.msra.mxu0 %v95
    %274 = vmatpush.msra.mxu0 %v94
    %275 = vmatmul.f32.gmra.mxu0 %v257
    %v276 = vpop.f32.mrf.mxu0
    %v277 = vadd.f32 %v101, %v276
    %278 = vdwg.mxu0
    %v280 = vrot.slane %v277, 4
    %v282 = vadd.f32 %v89, %v280
    %v283 = vxor.u32 %v282, 2147483648
    %v284 = vmul.f32 %v283, 1.442695
    %v285 = vpow.pop %v284
    %v286 = vadd.f32 %v285, 1.0
    %v287 = vrcp.pop %v286
    %v288 = vmul.f32 %v286, %v287
    %v289 = vsub.f32 1.0, %v288
    %v290 = vmul.f32 %v287, %v289
    %v291 = vadd.f32 %v287, %v290
    %vm292 = vweird.f32 %v286
    %vm293 = vweird.f32 %v287
    %vm294 = vmor %vm292, %vm293
    %v295 = vsel %vm294, %v287, %v291
    %v296 = vand.u32 2147483647, %v286
    %vm297 = vcmp.eq.f32.partialorder %v296, 8.507059e+37
    %v298 = vand.u32 %v286, 2147483648
    %v299 = vor.u32 1.1754944e-38, %v298
    %v300 = vsel %vm297, %v299, %v295
    %v301 = vmul.f32 1.0, %v300
    %302 = vrot.lane.b32.xlu0 %v280, 64
    %v303 = vpop.permute.xlu0 %302
    %v305 = vmul.f32 %v301, %v303
    %307 = vrot.lane.b32.xlu0 %v305, 64
    %v308 = vpop.permute.xlu0 %307
    %v310 = vadd.f32 %v89, %v308
    %v311 = vtanh.pop %v310
    %v312 = vsub.f32 1.0, %v301
    %314 = vrot.lane.b32.xlu0 %v311, 96
    %v315 = vpop.permute.xlu0 %314
    %v317 = vmul.f32 %v312, %v315
    %v318 = vrot.slane %v240, 6
    %v320 = vmul.f32 %v301, %v318
    %v321 = vadd.f32 %v317, %v320
    %vm322 = vcmp.eq.s32.totalorder %v99, 2
    %v323 = vsel %vm322, 1, 0
    %324 = vset.pattern.permute.xlu0 0
    %325 = vperm.xlu0 %324, %v323
    %v326 = vpop.permute.xlu0 %325
    %vm327 = vcmp.eq.s32.totalorder %v326, 1
    %v329 = vrot.slane %v321, 4
    %330 = vrot.lane.b32.xlu0 %v329, 96
    %v331 = vpop.permute.xlu0 %330
    %v333 = vsel %vm327, %v331, %v256
    %v334 = vsel %vm103, %v331, 0
    %336 = vmatpush.msra.mxu0 0.0
    %337 = vmatpush.msra.mxu0 0.0
    %338 = vmatpush.msra.mxu0 0.0
    %339 = vmatpush.msra.mxu0 0.0
    %340 = vmatpush.msra.mxu0 0.0
    %341 = vmatpush.msra.mxu0 0.0
    %342 = vmatpush.msra.mxu0 0.0
    %343 = vmatpush.msra.mxu0 0.0
    %344 = vmatpush.msra.mxu0 0.0
    %345 = vmatpush.msra.mxu0 0.0
    %346 = vmatpush.msra.mxu0 0.0
    %347 = vmatpush.msra.mxu0 0.0
    %348 = vmatpush.msra.mxu0 %v97
    %349 = vmatpush.msra.mxu0 %v96
    %350 = vmatpush.msra.mxu0 %v95
    %351 = vmatpush.msra.mxu0 %v94
    %352 = vmatmul.f32.gmra.mxu0 %v334
    %v353 = vpop.f32.mrf.mxu0
    %v354 = vadd.f32 %v101, %v353
    %355 = vdwg.mxu0
    %v357 = vrot.slane %v354, 2
    %v359 = vadd.f32 %v89, %v357
    %v360 = vxor.u32 %v359, 2147483648
    %v361 = vmul.f32 %v360, 1.442695
    %v362 = vpow.pop %v361
    %v363 = vadd.f32 %v362, 1.0
    %v364 = vrcp.pop %v363
    %v365 = vmul.f32 %v363, %v364
    %v366 = vsub.f32 1.0, %v365
    %v367 = vmul.f32 %v364, %v366
    %v368 = vadd.f32 %v364, %v367
    %vm369 = vweird.f32 %v363
    %vm370 = vweird.f32 %v364
    %vm371 = vmor %vm369, %vm370
    %v372 = vsel %vm371, %v364, %v368
    %v373 = vand.u32 2147483647, %v363
    %vm374 = vcmp.eq.f32.partialorder %v373, 8.507059e+37
    %v375 = vand.u32 %v363, 2147483648
    %v376 = vor.u32 1.1754944e-38, %v375
    %v377 = vsel %vm374, %v376, %v372
    %v378 = vmul.f32 1.0, %v377
    %379 = vrot.lane.b32.xlu0 %v357, 64
    %v380 = vpop.permute.xlu0 %379
    %v382 = vmul.f32 %v378, %v380
    %384 = vrot.lane.b32.xlu0 %v382, 64
    %v385 = vpop.permute.xlu0 %384
    %v387 = vadd.f32 %v89, %v385
    %v388 = vtanh.pop %v387
    %v389 = vsub.f32 1.0, %v378
    %391 = vrot.lane.b32.xlu0 %v388, 96
    %v392 = vpop.permute.xlu0 %391
    %v394 = vmul.f32 %v389, %v392
    %v395 = vrot.slane %v321, 6
    %v397 = vmul.f32 %v378, %v395
    %v398 = vadd.f32 %v394, %v397
    %vm399 = vcmp.eq.s32.totalorder %v99, 3
    %v400 = vsel %vm399, 1, 0
    %401 = vset.pattern.permute.xlu0 0
    %402 = vperm.xlu0 %401, %v400
    %v403 = vpop.permute.xlu0 %402
    %vm404 = vcmp.eq.s32.totalorder %v403, 1
    %v406 = vrot.slane %v398, 6
    %407 = vrot.lane.b32.xlu0 %v406, 96
    %v408 = vpop.permute.xlu0 %407
    %v410 = vsel %vm404, %v408, %v333
    %v411 = vsel %vm103, %v408, 0
    %413 = vmatpush.msra.mxu0 0.0
    %414 = vmatpush.msra.mxu0 0.0
    %415 = vmatpush.msra.mxu0 0.0
    %416 = vmatpush.msra.mxu0 0.0
    %417 = vmatpush.msra.mxu0 0.0
    %418 = vmatpush.msra.mxu0 0.0
    %419 = vmatpush.msra.mxu0 0.0
    %420 = vmatpush.msra.mxu0 0.0
    %421 = vmatpush.msra.mxu0 0.0
    %422 = vmatpush.msra.mxu0 0.0
    %423 = vmatpush.msra.mxu0 0.0
    %424 = vmatpush.msra.mxu0 0.0
    %425 = vmatpush.msra.mxu0 %v97
    %426 = vmatpush.msra.mxu0 %v96
    %427 = vmatpush.msra.mxu0 %v95
    %428 = vmatpush.msra.mxu0 %v94
    %429 = vmatmul.f32.gmra.mxu0 %v411
    %v430 = vpop.f32.mrf.mxu0
    %v431 = vadd.f32 %v101, %v430
    %432 = vdwg.mxu0
    %v433 = vadd.f32 %v92, %v431
    %v434 = vxor.u32 %v433, 2147483648
    %v435 = vmul.f32 %v434, 1.442695
    %v436 = vpow.pop %v435
    %v437 = vadd.f32 %v436, 1.0
    %v438 = vrcp.pop %v437
    %v439 = vmul.f32 %v437, %v438
    %v440 = vsub.f32 1.0, %v439
    %v441 = vmul.f32 %v438, %v440
    %v442 = vadd.f32 %v438, %v441
    %vm443 = vweird.f32 %v437
    %vm444 = vweird.f32 %v438
    %vm445 = vmor %vm443, %vm444
    %v446 = vsel %vm445, %v438, %v442
    %v447 = vand.u32 2147483647, %v437
    %vm448 = vcmp.eq.f32.partialorder %v447, 8.507059e+37
    %v449 = vand.u32 %v437, 2147483648
    %v450 = vor.u32 1.1754944e-38, %v449
    %v451 = vsel %vm448, %v450, %v446
    %v452 = vmul.f32 1.0, %v451
    %454 = vrot.lane.b32.xlu0 %v431, 64
    %v455 = vpop.permute.xlu0 %454
    %v457 = vmul.f32 %v452, %v455
    %459 = vrot.lane.b32.xlu0 %v457, 64
    %v460 = vpop.permute.xlu0 %459
    %v462 = vadd.f32 %v92, %v460
    %v463 = vtanh.pop %v462
    %v464 = vsub.f32 1.0, %v452
    %466 = vrot.lane.b32.xlu0 %v463, 96
    %v467 = vpop.permute.xlu0 %466
    %v469 = vmul.f32 %v464, %v467
    %v471 = vmul.f32 %v452, %v406
    %v472 = vadd.f32 %v469, %v471
    %vm473 = vcmp.eq.s32.totalorder %v99, 4
    %v474 = vsel %vm473, 1, 0
    %475 = vset.pattern.permute.xlu0 0
    %476 = vperm.xlu0 %475, %v474
    %v477 = vpop.permute.xlu0 %476
    %vm478 = vcmp.eq.s32.totalorder %v477, 1
    %480 = vrot.lane.b32.xlu0 %v410, 32
    %v481 = vpop.permute.xlu0 %480
    %v483 = vsel %vm478, %v472, %v481
    %485 = vrot.lane.b32.xlu0 %v472, 96
    %v486 = vpop.permute.xlu0 %485
    %v487 = vsel %vm103, %v486, 0
    %489 = vmatpush.msra.mxu0 0.0
    %490 = vmatpush.msra.mxu0 0.0
    %491 = vmatpush.msra.mxu0 0.0
    %492 = vmatpush.msra.mxu0 0.0
    %493 = vmatpush.msra.mxu0 0.0
    %494 = vmatpush.msra.mxu0 0.0
    %495 = vmatpush.msra.mxu0 0.0
    %496 = vmatpush.msra.mxu0 0.0
    %497 = vmatpush.msra.mxu0 0.0
    %498 = vmatpush.msra.mxu0 0.0
    %499 = vmatpush.msra.mxu0 0.0
    %500 = vmatpush.msra.mxu0 0.0
    %501 = vmatpush.msra.mxu0 %v97
    %502 = vmatpush.msra.mxu0 %v96
    %503 = vmatpush.msra.mxu0 %v95
    %504 = vmatpush.msra.mxu0 %v94
    %505 = vmatmul.f32.gmra.mxu0 %v487
    %v506 = vpop.f32.mrf.mxu0
    %v507 = vadd.f32 %v101, %v506
    %508 = vdwg.mxu0
    %v510 = vrot.slane %v507, 6
    %v512 = vadd.f32 %v92, %v510
    %v513 = vxor.u32 %v512, 2147483648
    %v514 = vmul.f32 %v513, 1.442695
    %v515 = vpow.pop %v514
    %v516 = vadd.f32 %v515, 1.0
    %v517 = vrcp.pop %v516
    %v518 = vmul.f32 %v516, %v517
    %v519 = vsub.f32 1.0, %v518
    %v520 = vmul.f32 %v517, %v519
    %v521 = vadd.f32 %v517, %v520
    %vm522 = vweird.f32 %v516
    %vm523 = vweird.f32 %v517
    %vm524 = vmor %vm522, %vm523
    %v525 = vsel %vm524, %v517, %v521
    %v526 = vand.u32 2147483647, %v516
    %vm527 = vcmp.eq.f32.partialorder %v526, 8.507059e+37
    %v528 = vand.u32 %v516, 2147483648
    %v529 = vor.u32 1.1754944e-38, %v528
    %v530 = vsel %vm527, %v529, %v525
    %v531 = vmul.f32 1.0, %v530
    %532 = vrot.lane.b32.xlu0 %v510, 64
    %v533 = vpop.permute.xlu0 %532
    %v535 = vmul.f32 %v531, %v533
    %537 = vrot.lane.b32.xlu0 %v535, 64
    %v538 = vpop.permute.xlu0 %537
    %v540 = vadd.f32 %v92, %v538
    %v541 = vtanh.pop %v540
    %v542 = vsub.f32 1.0, %v531
    %544 = vrot.lane.b32.xlu0 %v541, 96
    %v545 = vpop.permute.xlu0 %544
    %v547 = vmul.f32 %v542, %v545
    %v548 = vrot.slane %v472, 6
    %v550 = vmul.f32 %v531, %v548
    %v551 = vadd.f32 %v547, %v550
    %vm552 = vcmp.eq.s32.totalorder %v99, 5
    %v553 = vsel %vm552, 1, 0
    %554 = vset.pattern.permute.xlu0 0
    %555 = vperm.xlu0 %554, %v553
    %v556 = vpop.permute.xlu0 %555
    %vm557 = vcmp.eq.s32.totalorder %v556, 1
    %v559 = vrot.slane %v551, 2
    %560 = vrot.lane.b32.xlu0 %v559, 96
    %v561 = vpop.permute.xlu0 %560
    %564 = vrot.lane.b32.xlu0 %v483, 96
    %v565 = vpop.permute.xlu0 %564
    %v567 = vsel %vm557, %v561, %v565
    %v568 = vsel %vm103, %v561, 0
    %570 = vmatpush.msra.mxu0 0.0
    %571 = vmatpush.msra.mxu0 0.0
    %572 = vmatpush.msra.mxu0 0.0
    %573 = vmatpush.msra.mxu0 0.0
    %574 = vmatpush.msra.mxu0 0.0
    %575 = vmatpush.msra.mxu0 0.0
    %576 = vmatpush.msra.mxu0 0.0
    %577 = vmatpush.msra.mxu0 0.0
    %578 = vmatpush.msra.mxu0 0.0
    %579 = vmatpush.msra.mxu0 0.0
    %580 = vmatpush.msra.mxu0 0.0
    %581 = vmatpush.msra.mxu0 0.0
    %582 = vmatpush.msra.mxu0 %v97
    %583 = vmatpush.msra.mxu0 %v96
    %584 = vmatpush.msra.mxu0 %v95
    %585 = vmatpush.msra.mxu0 %v94
    %586 = vmatmul.f32.gmra.mxu0 %v568
    %v587 = vpop.f32.mrf.mxu0
    %v588 = vadd.f32 %v101, %v587
    %589 = vdwg.mxu0
    %v591 = vrot.slane %v588, 4
    %v593 = vadd.f32 %v92, %v591
    %v594 = vxor.u32 %v593, 2147483648
    %v595 = vmul.f32 %v594, 1.442695
    %v596 = vpow.pop %v595
    %v597 = vadd.f32 %v596, 1.0
    %v598 = vrcp.pop %v597
    %v599 = vmul.f32 %v597, %v598
    %v600 = vsub.f32 1.0, %v599
    %v601 = vmul.f32 %v598, %v600
    %v602 = vadd.f32 %v598, %v601
    %vm603 = vweird.f32 %v597
    %vm604 = vweird.f32 %v598
    %vm605 = vmor %vm603, %vm604
    %v606 = vsel %vm605, %v598, %v602
    %v607 = vand.u32 2147483647, %v597
    %vm608 = vcmp.eq.f32.partialorder %v607, 8.507059e+37
    %v609 = vand.u32 %v597, 2147483648
    %v610 = vor.u32 1.1754944e-38, %v609
    %v611 = vsel %vm608, %v610, %v606
    %v612 = vmul.f32 1.0, %v611
    %613 = vrot.lane.b32.xlu0 %v591, 64
    %v614 = vpop.permute.xlu0 %613
    %v616 = vmul.f32 %v612, %v614
    %618 = vrot.lane.b32.xlu0 %v616, 64
    %v619 = vpop.permute.xlu0 %618
    %v621 = vadd.f32 %v92, %v619
    %v622 = vtanh.pop %v621
    %v623 = vsub.f32 1.0, %v612
    %625 = vrot.lane.b32.xlu0 %v622, 96
    %v626 = vpop.permute.xlu0 %625
    %v628 = vmul.f32 %v623, %v626
    %v629 = vrot.slane %v551, 6
    %v631 = vmul.f32 %v612, %v629
    %v632 = vadd.f32 %v628, %v631
    %vm633 = vcmp.eq.s32.totalorder %v99, 6
    %v634 = vsel %vm633, 1, 0
    %635 = vset.pattern.permute.xlu0 0
    %636 = vperm.xlu0 %635, %v634
    %v637 = vpop.permute.xlu0 %636
    %vm638 = vcmp.eq.s32.totalorder %v637, 1
    %v640 = vrot.slane %v632, 4
    %641 = vrot.lane.b32.xlu0 %v640, 96
    %v642 = vpop.permute.xlu0 %641
    %v644 = vsel %vm638, %v642, %v567
    %v645 = vsel %vm103, %v642, 0
    %647 = vmatpush.msra.mxu0 0.0
    %648 = vmatpush.msra.mxu0 0.0
    %649 = vmatpush.msra.mxu0 0.0
    %650 = vmatpush.msra.mxu0 0.0
    %651 = vmatpush.msra.mxu0 0.0
    %652 = vmatpush.msra.mxu0 0.0
    %653 = vmatpush.msra.mxu0 0.0
    %654 = vmatpush.msra.mxu0 0.0
    %655 = vmatpush.msra.mxu0 0.0
    %656 = vmatpush.msra.mxu0 0.0
    %657 = vmatpush.msra.mxu0 0.0
    %658 = vmatpush.msra.mxu0 0.0
    %659 = vmatpush.msra.mxu0 %v97
    %660 = vmatpush.msra.mxu0 %v96
    %661 = vmatpush.msra.mxu0 %v95
    %662 = vmatpush.msra.mxu0 %v94
    %663 = vmatmul.f32.gmra.mxu0 %v645
    %v664 = vpop.f32.mrf.mxu0
    %v665 = vadd.f32 %v101, %v664
    %666 = vdwg.mxu0
    %v668 = vrot.slane %v665, 2
    %v670 = vadd.f32 %v92, %v668
    %v671 = vxor.u32 %v670, 2147483648
    %v672 = vmul.f32 %v671, 1.442695
    %v673 = vpow.pop %v672
    %v674 = vadd.f32 %v673, 1.0
    %v675 = vrcp.pop %v674
    %v676 = vmul.f32 %v674, %v675
    %v677 = vsub.f32 1.0, %v676
    %v678 = vmul.f32 %v675, %v677
    %v679 = vadd.f32 %v675, %v678
    %vm680 = vweird.f32 %v674
    %vm681 = vweird.f32 %v675
    %vm682 = vmor %vm680, %vm681
    %v683 = vsel %vm682, %v675, %v679
    %v684 = vand.u32 2147483647, %v674
    %vm685 = vcmp.eq.f32.partialorder %v684, 8.507059e+37
    %v686 = vand.u32 %v674, 2147483648
    %v687 = vor.u32 1.1754944e-38, %v686
    %v688 = vsel %vm685, %v687, %v683
    %v689 = vmul.f32 1.0, %v688
    %690 = vrot.lane.b32.xlu0 %v668, 64
    %v691 = vpop.permute.xlu0 %690
    %v693 = vmul.f32 %v689, %v691
    %695 = vrot.lane.b32.xlu0 %v693, 64
    %v696 = vpop.permute.xlu0 %695
    %v698 = vadd.f32 %v92, %v696
    %v699 = vtanh.pop %v698
    %v700 = vsub.f32 1.0, %v689
    %702 = vrot.lane.b32.xlu0 %v699, 96
    %v703 = vpop.permute.xlu0 %702
    %v705 = vmul.f32 %v700, %v703
    %v706 = vrot.slane %v632, 6
    %v708 = vmul.f32 %v689, %v706
    %v709 = vadd.f32 %v705, %v708
    %vm710 = vcmp.eq.s32.totalorder %v99, 7
    %v711 = vsel %vm710, 1, 0
    %712 = vset.pattern.permute.xlu0 0
    %713 = vperm.xlu0 %712, %v711
    %v714 = vpop.permute.xlu0 %713
    %vm715 = vcmp.eq.s32.totalorder %v714, 1
    %v717 = vrot.slane %v709, 6
    %718 = vrot.lane.b32.xlu0 %v717, 96
    %v719 = vpop.permute.xlu0 %718
    %v721 = vsel %vm715, %v719, %v644
    %v722 = vld [vmem:[%s6] sm:$0xff]
    %v723 = vld [vmem:[%s6 + $0x8] sm:$0xff]
    %v724 = vld [vmem:[%s6 + $0x10] sm:$0xff]
    %v725 = vld [vmem:[%s6 + $0x18] sm:$0xff]
    %v726 = vld [vmem:[%s7] sm:$0x1]
    %v728 = vperm.slane %v726, 0
    %v731 = vsel %vm103, %v721, 0
    %733 = vmatpush.msra.mxu0 0.0
    %734 = vmatpush.msra.mxu0 0.0
    %735 = vmatpush.msra.mxu0 0.0
    %736 = vmatpush.msra.mxu0 0.0
    %737 = vmatpush.msra.mxu0 0.0
    %738 = vmatpush.msra.mxu0 0.0
    %739 = vmatpush.msra.mxu0 0.0
    %740 = vmatpush.msra.mxu0 0.0
    %741 = vmatpush.msra.mxu0 0.0
    %742 = vmatpush.msra.mxu0 0.0
    %743 = vmatpush.msra.mxu0 0.0
    %744 = vmatpush.msra.mxu0 0.0
    %745 = vmatpush.msra.mxu0 %v725
    %746 = vmatpush.msra.mxu0 %v724
    %747 = vmatpush.msra.mxu0 %v723
    %748 = vmatpush.msra.mxu0 %v722
    %749 = vmatmul.f32.gmra.mxu0 %v731
    %v750 = vpop.f32.mrf.mxu0
    %v751 = vadd.f32 %v728, %v750
    %752 = vdwg.mxu0
    %vm753 = vcmask 25600
    %754 = vst.msk [vmem:[#allocation5] sm:$0x3] %vm753, %v751
    %v755 = vld [vmem:[%s8] sm:$0x1f]
    %v756 = vld [vmem:[%s10] sm:$0x1]
    %v758 = vperm.slane %v756, 0
    %v761 = vsel %vm60, %v751, 0
    %v764 = vsel %vm67, %v755, 0
    %766 = vmatpush.msra.mxu0 0.0
    %767 = vmatpush.msra.mxu0 0.0
    %768 = vmatpush.msra.mxu0 0.0
    %769 = vmatpush.msra.mxu0 0.0
    %770 = vmatpush.msra.mxu0 0.0
    %771 = vmatpush.msra.mxu0 0.0
    %772 = vmatpush.msra.mxu0 0.0
    %773 = vmatpush.msra.mxu0 0.0
    %774 = vmatpush.msra.mxu0 0.0
    %775 = vmatpush.msra.mxu0 0.0
    %776 = vmatpush.msra.mxu0 0.0
    %777 = vmatpush.msra.mxu0 0.0
    %778 = vmatpush.msra.mxu0 0.0
    %779 = vmatpush.msra.mxu0 0.0
    %780 = vmatpush.msra.mxu0 0.0
    %781 = vmatpush.msra.mxu0 %v764
    %782 = vmatmul.f32.gmra.mxu0 %v761
    %v783 = vpop.f32.mrf.mxu0
    %v784 = vadd.f32 %v758, %v783
    %785 = vdwg.mxu0
    %v786 = vld [vmem:[%s9] sm:$0xff]
    %v787 = vld [vmem:[%s9 + $0x8] sm:$0xff]
    %v788 = vld [vmem:[%s9 + $0x10] sm:$0xff]
    %v789 = vld [vmem:[%s9 + $0x18] sm:$0xff]
    %v790 = vld [vmem:[%s11] sm:$0x1]
    %791 = vset.pattern.permute.xlu0 0
    %792 = vperm.xlu0 %791, %v53
    %v793 = vpop.permute.xlu0 %792
    %v795 = vperm.slane %v755, 4
    %v796 = vmul.f32 %v793, %v795
    %v797 = vadd.f32 %v784, %v796
    %v799 = vperm.slane %v790, 0
    %801 = vmatpush.msra.mxu0 0.0
    %802 = vmatpush.msra.mxu0 0.0
    %803 = vmatpush.msra.mxu0 0.0
    %804 = vmatpush.msra.mxu0 0.0
    %805 = vmatpush.msra.mxu0 0.0
    %806 = vmatpush.msra.mxu0 0.0
    %807 = vmatpush.msra.mxu0 0.0
    %808 = vmatpush.msra.mxu0 0.0
    %809 = vmatpush.msra.mxu0 0.0
    %810 = vmatpush.msra.mxu0 0.0
    %811 = vmatpush.msra.mxu0 0.0
    %812 = vmatpush.msra.mxu0 0.0
    %813 = vmatpush.msra.mxu0 %v789
    %814 = vmatpush.msra.mxu0 %v788
    %815 = vmatpush.msra.mxu0 %v787
    %816 = vmatpush.msra.mxu0 %v786
    %817 = vmatmul.f32.gmra.mxu0 %v105
    %v818 = vpop.f32.mrf.mxu0
    %v819 = vadd.f32 %v799, %v818
    %820 = vdwg.mxu0
    %v821 = vadd.f32 %v797, %v819
    %v822 = vxor.u32 %v821, 2147483648
    %v823 = vmul.f32 %v822, 1.442695
    %v824 = vpow.pop %v823
    %v825 = vadd.f32 %v824, 1.0
    %v826 = vrcp.pop %v825
    %v827 = vmul.f32 %v825, %v826
    %v828 = vsub.f32 1.0, %v827
    %v829 = vmul.f32 %v826, %v828
    %v830 = vadd.f32 %v826, %v829
    %vm831 = vweird.f32 %v825
    %vm832 = vweird.f32 %v826
    %vm833 = vmor %vm831, %vm832
    %v834 = vsel %vm833, %v826, %v830
    %v835 = vand.u32 2147483647, %v825
    %vm836 = vcmp.eq.f32.partialorder %v835, 8.507059e+37
    %v837 = vand.u32 %v825, 2147483648
    %v838 = vor.u32 1.1754944e-38, %v837
    %v839 = vsel %vm836, %v838, %v834
    %v840 = vmul.f32 1.0, %v839
    %842 = vrot.lane.b32.xlu0 %v819, 64
    %v843 = vpop.permute.xlu0 %842
    %v845 = vmul.f32 %v840, %v843
    %847 = vrot.lane.b32.xlu0 %v845, 64
    %v848 = vpop.permute.xlu0 %847
    %v850 = vadd.f32 %v797, %v848
    %v851 = vtanh.pop %v850
    %v852 = vsub.f32 1.0, %v840
    %854 = vrot.lane.b32.xlu0 %v851, 96
    %v855 = vpop.permute.xlu0 %854
    %v857 = vmul.f32 %v852, %v855
    %v858 = vmul.f32 %v840, 0.0
    %v859 = vadd.f32 %v857, %v858
    %v861 = vrot.slane %v796, 2
    %v863 = vadd.f32 %v784, %v861
    %865 = vrot.lane.b32.xlu0 %v859, 96
    %v866 = vpop.permute.xlu0 %865
    %v867 = vsel %vm103, %v866, 0
    %869 = vmatpush.msra.mxu0 0.0
    %870 = vmatpush.msra.mxu0 0.0
    %871 = vmatpush.msra.mxu0 0.0
    %872 = vmatpush.msra.mxu0 0.0
    %873 = vmatpush.msra.mxu0 0.0
    %874 = vmatpush.msra.mxu0 0.0
    %875 = vmatpush.msra.mxu0 0.0
    %876 = vmatpush.msra.mxu0 0.0
    %877 = vmatpush.msra.mxu0 0.0
    %878 = vmatpush.msra.mxu0 0.0
    %879 = vmatpush.msra.mxu0 0.0
    %880 = vmatpush.msra.mxu0 0.0
    %881 = vmatpush.msra.mxu0 %v789
    %882 = vmatpush.msra.mxu0 %v788
    %883 = vmatpush.msra.mxu0 %v787
    %884 = vmatpush.msra.mxu0 %v786
    %885 = vmatmul.f32.gmra.mxu0 %v867
    %v886 = vpop.f32.mrf.mxu0
    %v887 = vadd.f32 %v799, %v886
    %888 = vdwg.mxu0
    %v889 = vadd.f32 %v863, %v887
    %v890 = vxor.u32 %v889, 2147483648
    %v891 = vmul.f32 %v890, 1.442695
    %v892 = vpow.pop %v891
    %v893 = vadd.f32 %v892, 1.0
    %v894 = vrcp.pop %v893
    %v895 = vmul.f32 %v893, %v894
    %v896 = vsub.f32 1.0, %v895
    %v897 = vmul.f32 %v894, %v896
    %v898 = vadd.f32 %v894, %v897
    %vm899 = vweird.f32 %v893
    %vm900 = vweird.f32 %v894
    %vm901 = vmor %vm899, %vm900
    %v902 = vsel %vm901, %v894, %v898
    %v903 = vand.u32 2147483647, %v893
    %vm904 = vcmp.eq.f32.partialorder %v903, 8.507059e+37
    %v905 = vand.u32 %v893, 2147483648
    %v906 = vor.u32 1.1754944e-38, %v905
    %v907 = vsel %vm904, %v906, %v902
    %v908 = vmul.f32 1.0, %v907
    %910 = vrot.lane.b32.xlu0 %v887, 64
    %v911 = vpop.permute.xlu0 %910
    %v913 = vmul.f32 %v908, %v911
    %915 = vrot.lane.b32.xlu0 %v913, 64
    %v916 = vpop.permute.xlu0 %915
    %v918 = vadd.f32 %v863, %v916
    %v919 = vtanh.pop %v918
    %v920 = vsub.f32 1.0, %v908
    %922 = vrot.lane.b32.xlu0 %v919, 96
    %v923 = vpop.permute.xlu0 %922
    %v925 = vmul.f32 %v920, %v923
    %v926 = vmul.f32 %v908, %v859
    %v927 = vadd.f32 %v925, %v926
    %v928 = vrot.slane %v796, 4
    %v930 = vadd.f32 %v784, %v928
    %932 = vrot.lane.b32.xlu0 %v927, 96
    %v933 = vpop.permute.xlu0 %932
    %v934 = vsel %vm103, %v933, 0
    %936 = vmatpush.msra.mxu0 0.0
    %937 = vmatpush.msra.mxu0 0.0
    %938 = vmatpush.msra.mxu0 0.0
    %939 = vmatpush.msra.mxu0 0.0
    %940 = vmatpush.msra.mxu0 0.0
    %941 = vmatpush.msra.mxu0 0.0
    %942 = vmatpush.msra.mxu0 0.0
    %943 = vmatpush.msra.mxu0 0.0
    %944 = vmatpush.msra.mxu0 0.0
    %945 = vmatpush.msra.mxu0 0.0
    %946 = vmatpush.msra.mxu0 0.0
    %947 = vmatpush.msra.mxu0 0.0
    %948 = vmatpush.msra.mxu0 %v789
    %949 = vmatpush.msra.mxu0 %v788
    %950 = vmatpush.msra.mxu0 %v787
    %951 = vmatpush.msra.mxu0 %v786
    %952 = vmatmul.f32.gmra.mxu0 %v934
    %v953 = vpop.f32.mrf.mxu0
    %v954 = vadd.f32 %v799, %v953
    %955 = vdwg.mxu0
    %v956 = vadd.f32 %v930, %v954
    %v957 = vxor.u32 %v956, 2147483648
    %v958 = vmul.f32 %v957, 1.442695
    %v959 = vpow.pop %v958
    %v960 = vadd.f32 %v959, 1.0
    %v961 = vrcp.pop %v960
    %v962 = vmul.f32 %v960, %v961
    %v963 = vsub.f32 1.0, %v962
    %v964 = vmul.f32 %v961, %v963
    %v965 = vadd.f32 %v961, %v964
    %vm966 = vweird.f32 %v960
    %vm967 = vweird.f32 %v961
    %vm968 = vmor %vm966, %vm967
    %v969 = vsel %vm968, %v961, %v965
    %v970 = vand.u32 2147483647, %v960
    %vm971 = vcmp.eq.f32.partialorder %v970, 8.507059e+37
    %v972 = vand.u32 %v960, 2147483648
    %v973 = vor.u32 1.1754944e-38, %v972
    %v974 = vsel %vm971, %v973, %v969
    %v975 = vmul.f32 1.0, %v974
    %977 = vrot.lane.b32.xlu0 %v954, 64
    %v978 = vpop.permute.xlu0 %977
    %v980 = vmul.f32 %v975, %v978
    %982 = vrot.lane.b32.xlu0 %v980, 64
    %v983 = vpop.permute.xlu0 %982
    %v985 = vadd.f32 %v930, %v983
    %v986 = vtanh.pop %v985
    %v987 = vsub.f32 1.0, %v975
    %989 = vrot.lane.b32.xlu0 %v986, 96
    %v990 = vpop.permute.xlu0 %989
    %v992 = vmul.f32 %v987, %v990
    %v993 = vmul.f32 %v975, %v927
    %v994 = vadd.f32 %v992, %v993
    %v995 = vrot.slane %v796, 6
    %v997 = vadd.f32 %v784, %v995
    %999 = vrot.lane.b32.xlu0 %v994, 96
    %v1000 = vpop.permute.xlu0 %999
    %v1001 = vsel %vm103, %v1000, 0
    %1003 = vmatpush.msra.mxu0 0.0
    %1004 = vmatpush.msra.mxu0 0.0
    %1005 = vmatpush.msra.mxu0 0.0
    %1006 = vmatpush.msra.mxu0 0.0
    %1007 = vmatpush.msra.mxu0 0.0
    %1008 = vmatpush.msra.mxu0 0.0
    %1009 = vmatpush.msra.mxu0 0.0
    %1010 = vmatpush.msra.mxu0 0.0
    %1011 = vmatpush.msra.mxu0 0.0
    %1012 = vmatpush.msra.mxu0 0.0
    %1013 = vmatpush.msra.mxu0 0.0
    %1014 = vmatpush.msra.mxu0 0.0
    %1015 = vmatpush.msra.mxu0 %v789
    %1016 = vmatpush.msra.mxu0 %v788
    %1017 = vmatpush.msra.mxu0 %v787
    %1018 = vmatpush.msra.mxu0 %v786
    %1019 = vmatmul.f32.gmra.mxu0 %v1001
    %v1020 = vpop.f32.mrf.mxu0
    %v1021 = vadd.f32 %v799, %v1020
    %1022 = vdwg.mxu0
    %v1023 = vadd.f32 %v997, %v1021
    %v1024 = vxor.u32 %v1023, 2147483648
    %v1025 = vmul.f32 %v1024, 1.442695
    %v1026 = vpow.pop %v1025
    %v1027 = vadd.f32 %v1026, 1.0
    %v1028 = vrcp.pop %v1027
    %v1029 = vmul.f32 %v1027, %v1028
    %v1030 = vsub.f32 1.0, %v1029
    %v1031 = vmul.f32 %v1028, %v1030
    %v1032 = vadd.f32 %v1028, %v1031
    %vm1033 = vweird.f32 %v1027
    %vm1034 = vweird.f32 %v1028
    %vm1035 = vmor %vm1033, %vm1034
    %v1036 = vsel %vm1035, %v1028, %v1032
    %v1037 = vand.u32 2147483647, %v1027
    %vm1038 = vcmp.eq.f32.partialorder %v1037, 8.507059e+37
    %v1039 = vand.u32 %v1027, 2147483648
    %v1040 = vor.u32 1.1754944e-38, %v1039
    %v1041 = vsel %vm1038, %v1040, %v1036
    %v1042 = vmul.f32 1.0, %v1041
    %1044 = vrot.lane.b32.xlu0 %v1021, 64
    %v1045 = vpop.permute.xlu0 %1044
    %v1047 = vmul.f32 %v1042, %v1045
    %1049 = vrot.lane.b32.xlu0 %v1047, 64
    %v1050 = vpop.permute.xlu0 %1049
    %v1052 = vadd.f32 %v997, %v1050
    %v1053 = vtanh.pop %v1052
    %v1054 = vsub.f32 1.0, %v1042
    %1056 = vrot.lane.b32.xlu0 %v1053, 96
    %v1057 = vpop.permute.xlu0 %1056
    %v1059 = vmul.f32 %v1054, %v1057
    %v1060 = vmul.f32 %v1042, %v994
    %v1061 = vadd.f32 %v1059, %v1060
    %1062 = vset.pattern.permute.xlu0 0
    %1063 = vperm.xlu0 %1062, %v54
    %v1064 = vpop.permute.xlu0 %1063
    %v1066 = vmul.f32 %v1064, %v795
    %v1067 = vadd.f32 %v784, %v1066
    %1069 = vrot.lane.b32.xlu0 %v1061, 96
    %v1070 = vpop.permute.xlu0 %1069
    %v1071 = vsel %vm103, %v1070, 0
    %1073 = vmatpush.msra.mxu0 0.0
    %1074 = vmatpush.msra.mxu0 0.0
    %1075 = vmatpush.msra.mxu0 0.0
    %1076 = vmatpush.msra.mxu0 0.0
    %1077 = vmatpush.msra.mxu0 0.0
    %1078 = vmatpush.msra.mxu0 0.0
    %1079 = vmatpush.msra.mxu0 0.0
    %1080 = vmatpush.msra.mxu0 0.0
    %1081 = vmatpush.msra.mxu0 0.0
    %1082 = vmatpush.msra.mxu0 0.0
    %1083 = vmatpush.msra.mxu0 0.0
    %1084 = vmatpush.msra.mxu0 0.0
    %1085 = vmatpush.msra.mxu0 %v789
    %1086 = vmatpush.msra.mxu0 %v788
    %1087 = vmatpush.msra.mxu0 %v787
    %1088 = vmatpush.msra.mxu0 %v786
    %1089 = vmatmul.f32.gmra.mxu0 %v1071
    %v1090 = vpop.f32.mrf.mxu0
    %v1091 = vadd.f32 %v799, %v1090
    %1092 = vdwg.mxu0
    %v1093 = vadd.f32 %v1067, %v1091
    %v1094 = vxor.u32 %v1093, 2147483648
    %v1095 = vmul.f32 %v1094, 1.442695
    %v1096 = vpow.pop %v1095
    %v1097 = vadd.f32 %v1096, 1.0
    %v1098 = vrcp.pop %v1097
    %v1099 = vmul.f32 %v1097, %v1098
    %v1100 = vsub.f32 1.0, %v1099
    %v1101 = vmul.f32 %v1098, %v1100
    %v1102 = vadd.f32 %v1098, %v1101
    %vm1103 = vweird.f32 %v1097
    %vm1104 = vweird.f32 %v1098
    %vm1105 = vmor %vm1103, %vm1104
    %v1106 = vsel %vm1105, %v1098, %v1102
    %v1107 = vand.u32 2147483647, %v1097
    %vm1108 = vcmp.eq.f32.partialorder %v1107, 8.507059e+37
    %v1109 = vand.u32 %v1097, 2147483648
    %v1110 = vor.u32 1.1754944e-38, %v1109
    %v1111 = vsel %vm1108, %v1110, %v1106
    %v1112 = vmul.f32 1.0, %v1111
    %1114 = vrot.lane.b32.xlu0 %v1091, 64
    %v1115 = vpop.permute.xlu0 %1114
    %v1117 = vmul.f32 %v1112, %v1115
    %1119 = vrot.lane.b32.xlu0 %v1117, 64
    %v1120 = vpop.permute.xlu0 %1119
    %v1122 = vadd.f32 %v1067, %v1120
    %v1123 = vtanh.pop %v1122
    %v1124 = vsub.f32 1.0, %v1112
    %1126 = vrot.lane.b32.xlu0 %v1123, 96
    %v1127 = vpop.permute.xlu0 %1126
    %v1129 = vmul.f32 %v1124, %v1127
    %v1130 = vmul.f32 %v1112, %v1061
    %v1131 = vadd.f32 %v1129, %v1130
    %v1133 = vrot.slane %v1066, 2
    %v1135 = vadd.f32 %v784, %v1133
    %1137 = vrot.lane.b32.xlu0 %v1131, 96
    %v1138 = vpop.permute.xlu0 %1137
    %v1139 = vsel %vm103, %v1138, 0
    %1141 = vmatpush.msra.mxu0 0.0
    %1142 = vmatpush.msra.mxu0 0.0
    %1143 = vmatpush.msra.mxu0 0.0
    %1144 = vmatpush.msra.mxu0 0.0
    %1145 = vmatpush.msra.mxu0 0.0
    %1146 = vmatpush.msra.mxu0 0.0
    %1147 = vmatpush.msra.mxu0 0.0
    %1148 = vmatpush.msra.mxu0 0.0
    %1149 = vmatpush.msra.mxu0 0.0
    %1150 = vmatpush.msra.mxu0 0.0
    %1151 = vmatpush.msra.mxu0 0.0
    %1152 = vmatpush.msra.mxu0 0.0
    %1153 = vmatpush.msra.mxu0 %v789
    %1154 = vmatpush.msra.mxu0 %v788
    %1155 = vmatpush.msra.mxu0 %v787
    %1156 = vmatpush.msra.mxu0 %v786
    %1157 = vmatmul.f32.gmra.mxu0 %v1139
    %v1158 = vpop.f32.mrf.mxu0
    %v1159 = vadd.f32 %v799, %v1158
    %1160 = vdwg.mxu0
    %v1161 = vadd.f32 %v1135, %v1159
    %v1162 = vxor.u32 %v1161, 2147483648
    %v1163 = vmul.f32 %v1162, 1.442695
    %v1164 = vpow.pop %v1163
    %v1165 = vadd.f32 %v1164, 1.0
    %v1166 = vrcp.pop %v1165
    %v1167 = vmul.f32 %v1165, %v1166
    %v1168 = vsub.f32 1.0, %v1167
    %v1169 = vmul.f32 %v1166, %v1168
    %v1170 = vadd.f32 %v1166, %v1169
    %vm1171 = vweird.f32 %v1165
    %vm1172 = vweird.f32 %v1166
    %vm1173 = vmor %vm1171, %vm1172
    %v1174 = vsel %vm1173, %v1166, %v1170
    %v1175 = vand.u32 2147483647, %v1165
    %vm1176 = vcmp.eq.f32.partialorder %v1175, 8.507059e+37
    %v1177 = vand.u32 %v1165, 2147483648
    %v1178 = vor.u32 1.1754944e-38, %v1177
    %v1179 = vsel %vm1176, %v1178, %v1174
    %v1180 = vmul.f32 1.0, %v1179
    %1182 = vrot.lane.b32.xlu0 %v1159, 64
    %v1183 = vpop.permute.xlu0 %1182
    %v1185 = vmul.f32 %v1180, %v1183
    %1187 = vrot.lane.b32.xlu0 %v1185, 64
    %v1188 = vpop.permute.xlu0 %1187
    %v1190 = vadd.f32 %v1135, %v1188
    %v1191 = vtanh.pop %v1190
    %v1192 = vsub.f32 1.0, %v1180
    %1194 = vrot.lane.b32.xlu0 %v1191, 96
    %v1195 = vpop.permute.xlu0 %1194
    %v1197 = vmul.f32 %v1192, %v1195
    %v1198 = vmul.f32 %v1180, %v1131
    %v1199 = vadd.f32 %v1197, %v1198
    %v1200 = vrot.slane %v1066, 4
    %v1202 = vadd.f32 %v784, %v1200
    %1204 = vrot.lane.b32.xlu0 %v1199, 96
    %v1205 = vpop.permute.xlu0 %1204
    %v1206 = vsel %vm103, %v1205, 0
    %1208 = vmatpush.msra.mxu0 0.0
    %1209 = vmatpush.msra.mxu0 0.0
    %1210 = vmatpush.msra.mxu0 0.0
    %1211 = vmatpush.msra.mxu0 0.0
    %1212 = vmatpush.msra.mxu0 0.0
    %1213 = vmatpush.msra.mxu0 0.0
    %1214 = vmatpush.msra.mxu0 0.0
    %1215 = vmatpush.msra.mxu0 0.0
    %1216 = vmatpush.msra.mxu0 0.0
    %1217 = vmatpush.msra.mxu0 0.0
    %1218 = vmatpush.msra.mxu0 0.0
    %1219 = vmatpush.msra.mxu0 0.0
    %1220 = vmatpush.msra.mxu0 %v789
    %1221 = vmatpush.msra.mxu0 %v788
    %1222 = vmatpush.msra.mxu0 %v787
    %1223 = vmatpush.msra.mxu0 %v786
    %1224 = vmatmul.f32.gmra.mxu0 %v1206
    %v1225 = vpop.f32.mrf.mxu0
    %v1226 = vadd.f32 %v799, %v1225
    %1227 = vdwg.mxu0
    %v1228 = vadd.f32 %v1202, %v1226
    %v1229 = vxor.u32 %v1228, 2147483648
    %v1230 = vmul.f32 %v1229, 1.442695
    %v1231 = vpow.pop %v1230
    %v1232 = vadd.f32 %v1231, 1.0
    %v1233 = vrcp.pop %v1232
    %v1234 = vmul.f32 %v1232, %v1233
    %v1235 = vsub.f32 1.0, %v1234
    %v1236 = vmul.f32 %v1233, %v1235
    %v1237 = vadd.f32 %v1233, %v1236
    %vm1238 = vweird.f32 %v1232
    %vm1239 = vweird.f32 %v1233
    %vm1240 = vmor %vm1238, %vm1239
    %v1241 = vsel %vm1240, %v1233, %v1237
    %v1242 = vand.u32 2147483647, %v1232
    %vm1243 = vcmp.eq.f32.partialorder %v1242, 8.507059e+37
    %v1244 = vand.u32 %v1232, 2147483648
    %v1245 = vor.u32 1.1754944e-38, %v1244
    %v1246 = vsel %vm1243, %v1245, %v1241
    %v1247 = vmul.f32 1.0, %v1246
    %1249 = vrot.lane.b32.xlu0 %v1226, 64
    %v1250 = vpop.permute.xlu0 %1249
    %v1252 = vmul.f32 %v1247, %v1250
    %1254 = vrot.lane.b32.xlu0 %v1252, 64
    %v1255 = vpop.permute.xlu0 %1254
    %v1257 = vadd.f32 %v1202, %v1255
    %v1258 = vtanh.pop %v1257
    %v1259 = vsub.f32 1.0, %v1247
    %1261 = vrot.lane.b32.xlu0 %v1258, 96
    %v1262 = vpop.permute.xlu0 %1261
    %v1264 = vmul.f32 %v1259, %v1262
    %v1265 = vmul.f32 %v1247, %v1199
    %v1266 = vadd.f32 %v1264, %v1265
    %v1267 = vrot.slane %v1066, 6
    %v1269 = vadd.f32 %v784, %v1267
    %1271 = vrot.lane.b32.xlu0 %v1266, 96
    %v1272 = vpop.permute.xlu0 %1271
    %v1273 = vsel %vm103, %v1272, 0
    %1275 = vmatpush.msra.mxu0 0.0
    %1276 = vmatpush.msra.mxu0 0.0
    %1277 = vmatpush.msra.mxu0 0.0
    %1278 = vmatpush.msra.mxu0 0.0
    %1279 = vmatpush.msra.mxu0 0.0
    %1280 = vmatpush.msra.mxu0 0.0
    %1281 = vmatpush.msra.mxu0 0.0
    %1282 = vmatpush.msra.mxu0 0.0
    %1283 = vmatpush.msra.mxu0 0.0
    %1284 = vmatpush.msra.mxu0 0.0
    %1285 = vmatpush.msra.mxu0 0.0
    %1286 = vmatpush.msra.mxu0 0.0
    %1287 = vmatpush.msra.mxu0 %v789
    %1288 = vmatpush.msra.mxu0 %v788
    %1289 = vmatpush.msra.mxu0 %v787
    %1290 = vmatpush.msra.mxu0 %v786
    %1291 = vmatmul.f32.gmra.mxu0 %v1273
    %v1292 = vpop.f32.mrf.mxu0
    %v1293 = vadd.f32 %v799, %v1292
    %1294 = vdwg.mxu0
    %v1295 = vadd.f32 %v1269, %v1293
    %v1296 = vxor.u32 %v1295, 2147483648
    %v1297 = vmul.f32 %v1296, 1.442695
    %v1298 = vpow.pop %v1297
    %v1299 = vadd.f32 %v1298, 1.0
    %v1300 = vrcp.pop %v1299
    %v1301 = vmul.f32 %v1299, %v1300
    %v1302 = vsub.f32 1.0, %v1301
    %v1303 = vmul.f32 %v1300, %v1302
    %v1304 = vadd.f32 %v1300, %v1303
    %vm1305 = vweird.f32 %v1299
    %vm1306 = vweird.f32 %v1300
    %vm1307 = vmor %vm1305, %vm1306
    %v1308 = vsel %vm1307, %v1300, %v1304
    %v1309 = vand.u32 2147483647, %v1299
    %vm1310 = vcmp.eq.f32.partialorder %v1309, 8.507059e+37
    %v1311 = vand.u32 %v1299, 2147483648
    %v1312 = vor.u32 1.1754944e-38, %v1311
    %v1313 = vsel %vm1310, %v1312, %v1308
    %v1314 = vmul.f32 1.0, %v1313
    %1316 = vrot.lane.b32.xlu0 %v1293, 64
    %v1317 = vpop.permute.xlu0 %1316
    %v1319 = vmul.f32 %v1314, %v1317
    %1321 = vrot.lane.b32.xlu0 %v1319, 64
    %v1322 = vpop.permute.xlu0 %1321
    %v1324 = vadd.f32 %v1269, %v1322
    %v1325 = vtanh.pop %v1324
    %v1326 = vsub.f32 1.0, %v1314
    %1328 = vrot.lane.b32.xlu0 %v1325, 96
    %v1329 = vpop.permute.xlu0 %1328
    %v1331 = vmul.f32 %v1326, %v1329
    %v1332 = vmul.f32 %v1314, %v1266
    %v1333 = vadd.f32 %v1331, %v1332
    %v1334 = vrot.slane %v927, 6
    %v1336 = vrot.slane %v994, 4
    %v1338 = vrot.slane %v1061, 2
    %v1340 = vrot.slane %v1199, 6
    %v1342 = vrot.slane %v1266, 4
    %v1345 = vrot.slane %v1333, 2
    %vm1347 = vcmask 1041408
    %v1348 = vsel %vm1347, %v859, %v1334
    %v1349 = vsel %vm67, %v1348, %v1336
    %vm1350 = vcmask 1045504
    %v1351 = vsel %vm1350, %v1349, %v1338
    %v1352 = vsel %vm1347, %v1131, %v1340
    %v1353 = vsel %vm67, %v1352, %v1342
    %v1354 = vsel %vm1350, %v1353, %v1345
    %v1355 = vld [vmem:[%s12] sm:$0xff]
    %v1356 = vld [vmem:[%s12 + $0x8] sm:$0xff]
    %v1357 = vld [vmem:[%s12 + $0x10] sm:$0xff]
    %v1358 = vld [vmem:[%s12 + $0x18] sm:$0xff]
    %v1359 = vld [vmem:[#allocation2] sm:$0x1]
    %v1361 = vperm.slane %v1359, 0
    %1365 = vrot.lane.b32.xlu0 %v1351, 96
    %v1366 = vpop.permute.xlu0 %1365
    %1367 = vrot.lane.b32.xlu0 %v1354, 96
    %v1368 = vpop.permute.xlu0 %1367
    %v1369 = vsel %vm103, %v1366, 0
    %v1371 = vsel %vm103, %v1368, 0
    %1373 = vmatpush.msra.mxu0 0.0
    %1374 = vmatpush.msra.mxu0 0.0
    %1375 = vmatpush.msra.mxu0 0.0
    %1376 = vmatpush.msra.mxu0 0.0
    %1377 = vmatpush.msra.mxu0 0.0
    %1378 = vmatpush.msra.mxu0 0.0
    %1379 = vmatpush.msra.mxu0 0.0
    %1380 = vmatpush.msra.mxu0 0.0
    %1381 = vmatpush.msra.mxu0 0.0
    %1382 = vmatpush.msra.mxu0 0.0
    %1383 = vmatpush.msra.mxu0 0.0
    %1384 = vmatpush.msra.mxu0 0.0
    %1385 = vmatpush.msra.mxu0 %v1358
    %1386 = vmatpush.msra.mxu0 %v1357
    %1387 = vmatpush.msra.mxu0 %v1356
    %1388 = vmatpush.msra.mxu0 %v1355
    %1389 = vmatmul.f32.gmra.mxu0 %v1369
    %v1390 = vpop.f32.mrf.mxu0
    %v1391 = vadd.f32 %v1361, %v1390
    %1392 = vmatmul.f32.gmra.mxu0 %v1371
    %v1393 = vpop.f32.mrf.mxu0
    %v1394 = vadd.f32 %v1361, %v1393
    %1395 = vdwg.mxu0
    %v1397 = vrot.slane %v1391, 2
    %1398 = vrot.lane.b32.xlu0 %v1397, 1
    %v1399 = vpop.permute.xlu0 %1398
    %v1401 = vrot.slane %v1391, 4
    %1402 = vrot.lane.b32.xlu0 %v1401, 2
    %v1403 = vpop.permute.xlu0 %1402
    %v1405 = vrot.slane %v1391, 6
    %1406 = vrot.lane.b32.xlu0 %v1405, 3
    %v1407 = vpop.permute.xlu0 %1406
    %1410 = vrot.lane.b32.xlu0 %v1394, 4
    %v1411 = vpop.permute.xlu0 %1410
    %v1413 = vrot.slane %v1394, 2
    %1414 = vrot.lane.b32.xlu0 %v1413, 5
    %v1415 = vpop.permute.xlu0 %1414
    %v1417 = vrot.slane %v1394, 4
    %1418 = vrot.lane.b32.xlu0 %v1417, 6
    %v1419 = vpop.permute.xlu0 %1418
    %v1421 = vrot.slane %v1394, 6
    %1422 = vrot.lane.b32.xlu0 %v1421, 7
    %v1423 = vpop.permute.xlu0 %1422
    %vm1425 = vcmask 7168
    %v1426 = vsel %vm1425, %v1391, %v1399
    %vm1427 = vcmask 15360
    %v1428 = vsel %vm1427, %v1426, %v1403
    %vm1429 = vcmask 23552
    %v1430 = vsel %vm1429, %v1428, %v1407
    %v1431 = vsel %vm60, %v1430, %v1411
    %vm1432 = vcmask 39936
    %v1433 = vsel %vm1432, %v1431, %v1415
    %vm1434 = vcmask 48128
    %v1435 = vsel %vm1434, %v1433, %v1419
    %vm1436 = vcmask 56320
    %v1437 = vsel %vm1436, %v1435, %v1423
    %vm1438 = vcmask 58368
    %1439 = vst.msk [vmem:[#allocation3] sm:$0x3] %vm1438, %v1437
    // Predicated region
    $region58: #{gruae_forward.1} parent=1 // pred_check
      _
    $region59: #{gruae_forward.1} parent=1 // pred_check_branch
      %1441 = sbr.rel (0) target = $region61
    $region60: #{gruae_forward.1} parent=1 // pred_region
      %1443 = vsyncadd [#allocation4], 0
      %s1445 = sshll.u32 [#allocation3], 4
      %s1446 = int_to_ptr.vmem [resolvable:$true] %s1445
      %s1447 = sshll.u32 %s14, 4
      %s1448 = int_to_ptr.hbm [resolvable:$true] %s1447
      %1450 = dma.vmem_to_hbm [thread:$0]  %s1446, 32, %s1448, [#allocation4]
    $region61: #{gruae_forward.1} parent=1 // pred_fallthru
      _
    // Predicated region
    $region62: #{gruae_forward.1} parent=1 // pred_check
      _
    $region63: #{gruae_forward.1} parent=1 // pred_check_branch
      %1452 = sbr.rel (0) target = $region65
    $region64: #{gruae_forward.1} parent=1 // pred_region
      %1454 = vsyncadd [#allocation6], 0
      %s1456 = sshll.u32 [#allocation5], 4
      %s1457 = int_to_ptr.vmem [resolvable:$true] %s1456
      %s1458 = sshll.u32 %s15, 4
      %s1459 = int_to_ptr.hbm [resolvable:$true] %s1458
      %1461 = dma.vmem_to_hbm [thread:$0]  %s1457, 32, %s1459, [#allocation6]
    $region65: #{gruae_forward.1} parent=1 // pred_fallthru
      _
    // Predicated region
    $region66: #{gruae_forward.1} parent=1 // pred_check
      _
    $region67: #{gruae_forward.1} parent=1 // pred_check_branch
      %1463 = sbr.rel (0) target = $region69
    $region68: #{gruae_forward.1} parent=1 // pred_region
      %1465 = dma.done [#allocation4], 32
    $region69: #{gruae_forward.1} parent=1 // pred_fallthru
      _
    // Predicated region
    $region70: #{gruae_forward.1} parent=1 // pred_check
      _
    $region71: #{gruae_forward.1} parent=1 // pred_check_branch
      %1467 = sbr.rel (0) target = $region73
    $region72: #{gruae_forward.1} parent=1 // pred_region
      %1469 = dma.done [#allocation6], 32
    $region73: #{gruae_forward.1} parent=1 // pred_fallthru
      _
    %1470 = vsyncpa [#allocation4], 1
    %1471 = vsyncpa [#allocation6], 1

</llo_original>
